<compile_context>
chip_gen: v6e
topology: v6e:2x2x1
jax: 0.10.0
libtpu: 0.0.40
codegen_flags: <defaults>
</compile_context>

<pallas_src>
import functools

import jax
import jax.numpy as jnp
from jax.experimental import pallas as pl
from jax.experimental.pallas import tpu as pltpu

_VMEM_LIMIT_BYTES = 48 * 1024 * 1024   # safe on v5e/v6e (128 MiB) and v7x (64 MiB/TC)
_TILE_BUDGET_BYTES = 20 * 1024 * 1024  # per-tile footprint target (incl. buffers)


def _msc_kernel(x_ref, w0_ref, w1_ref, w2_ref, b_ref, o_ref, *, W, pow2_w):
    L = x_ref.shape[1]          # TH * W  (flattened pixels in this tile)
    x = x_ref[0]                # (L, C) in the pool/matmul dtype (bf16 or f32)

    # --- parity masks at (L, 1); jnp.where lane-broadcasts them for free ----
    idx = jax.lax.broadcasted_iota(jnp.int32, (L, 1), 0)
    # W % 4 == 0  =>  idx % 2 == col % 2 and idx % 4 == col % 4 (no div/mod).
    col_even2 = (idx & 1) == 0            # even column of the 2x2 block
    col_lo4 = (idx & 3) < 2               # lower half of the 4-column group
    if pow2_w:
        row_even2 = (idx & (2 * W - 1)) < W        # even row of the 2x2 block
        row_lo4 = (idx & (4 * W - 1)) < (2 * W)    # lower half of 4-row group
    else:
        row_even2 = (idx % (2 * W)) < W
        row_lo4 = (idx % (4 * W)) < (2 * W)
    # idx is dead from here on; masks are (L, 1) bools only.

    def shift(v, k):
        # v[i + k] (k may be negative).  pltpu.roll has jnp.roll semantics
        # (result[i] = v[i - s]), so shift-by-k is a single roll by (-k) mod L.
        # The parity masks guarantee a wrapped element is never selected.
        return pltpu.roll(v, (-k) % L, axis=0)

    # --- dot with the original x while it is still live ---------------------
    acc = jnp.dot(x, w0_ref[...], preferred_element_type=jnp.float32)

    # --- maxpool 2x2 stride 2, nearest-upsampled back to (TH, W) ------------
    xw = jnp.maximum(x, jnp.where(col_even2, shift(x, 1), shift(x, -1)))
    x1 = jnp.maximum(xw, jnp.where(row_even2, shift(xw, W), shift(xw, -W)))
    acc = acc + jnp.dot(x1, w1_ref[...], preferred_element_type=jnp.float32)

    # --- maxpool 4x4 stride 4 (built from the 2x2 result), upsampled ---------
    xq = jnp.maximum(x1, jnp.where(col_lo4, shift(x1, 2), shift(x1, -2)))
    x2 = jnp.maximum(xq, jnp.where(row_lo4, shift(xq, 2 * W), shift(xq, -2 * W)))
    acc = acc + jnp.dot(x2, w2_ref[...], preferred_element_type=jnp.float32)

    # --- bias + ReLU ---------------------------------------------------------
    o_ref[0] = jnp.maximum(acc + b_ref[...], 0.0).astype(o_ref.dtype)


def _pick_tile_rows(H, W, C, B, in_itemsize, out_itemsize,
                    budget_bytes=_TILE_BUDGET_BYTES, min_tiles=4):
    """Largest TH (multiple of 4 dividing H) whose estimated total VMEM
    footprint fits the budget, preferring >= min_tiles grid steps (megacore)."""
    def footprint(th):
        lc = th * W * C
        # 2 double-buffered input blocks + 2 output blocks (pipeline)
        # + ~4 live (L, C) intermediates in the pool dtype + 1 f32 accumulator.
        return lc * (2 * in_itemsize + 2 * out_itemsize + 4 * in_itemsize + 4)

    cands = [th for th in range(4, H + 1, 4)
             if H % th == 0 and footprint(th) <= budget_bytes]
    if not cands:
        # Even the smallest legal tile exceeds the budget; take it anyway
        # (further shrinking would require tiling W or C, which this kernel
        # does not do) and rely on the explicit vmem_limit_bytes headroom.
        return 4
    good = [th for th in cands if B * (H // th) >= min_tiles]
    return max(good) if good else max(cands)


def msc_forward_nhwc(x_nhwc, weight, bias, *, use_bf16=True, out_dtype=None,
                     tile_rows=None):
    """x_nhwc: (B, H, W, C); weight: (C, 3C) [1x1 conv, kernel dims squeezed];
    bias: (C,).  Returns (B, H, W, C) in out_dtype (default: x's dtype).
    Prefer this entry point if the surrounding model is NHWC (no transposes).
    Set out_dtype=jnp.bfloat16 if downstream accepts it to halve writeback."""
    B, H, W, C = x_nhwc.shape
    assert H % 4 == 0 and W % 4 == 0, "spatial dims must be divisible by 4"
    # TODO(synk): if the real model's C < 128, the lane dim is under-occupied
    # and output stores are masked; repacking channels (pixel pairs into lanes)
    # would be needed for a lane-dense layout.

    in_dtype = jnp.bfloat16 if use_bf16 else x_nhwc.dtype
    out_dtype = x_nhwc.dtype if out_dtype is None else out_dtype
    in_sz = jnp.dtype(in_dtype).itemsize
    out_sz = jnp.dtype(out_dtype).itemsize

    TH = _pick_tile_rows(H, W, C, B, in_sz, out_sz) if tile_rows is None else tile_rows
    assert TH % 4 == 0 and H % TH == 0, "tile rows must be a multiple of 4 dividing H"
    L = TH * W
    pow2_w = (W & (W - 1)) == 0

    x = x_nhwc.astype(in_dtype).reshape(B, H * W, C)
    wt = jnp.transpose(weight).astype(in_dtype)     # (3C, C): wt[ci, co]
    w0 = wt[0:C]                                    # weights for x
    w1 = wt[C:2 * C]                                # weights for x1 (2x2 pool)
    w2 = wt[2 * C:3 * C]                            # weights for x2 (4x4 pool)
    b = bias.reshape(1, C).astype(jnp.float32)

    kernel = functools.partial(_msc_kernel, W=W, pow2_w=pow2_w)

    cost = pl.CostEstimate(
        flops=6 * B * H * W * C * C,
        transcendentals=0,
        bytes_accessed=B * H * W * C * (in_sz + out_sz) + 3 * C * C * in_sz,
    )

    out = pl.pallas_call(
        kernel,
        out_shape=jax.ShapeDtypeStruct((B, H * W, C), out_dtype),
        grid_spec=pltpu.PrefetchScalarGridSpec(
            num_scalar_prefetch=0,
            grid=(B, H // TH),
            in_specs=[
                pl.BlockSpec((1, L, C), lambda bi, ti: (bi, ti, 0)),
                pl.BlockSpec((C, C), lambda bi, ti: (0, 0)),
                pl.BlockSpec((C, C), lambda bi, ti: (0, 0)),
                pl.BlockSpec((C, C), lambda bi, ti: (0, 0)),
                pl.BlockSpec((1, C), lambda bi, ti: (0, 0)),
            ],
            out_specs=pl.BlockSpec((1, L, C), lambda bi, ti: (bi, ti, 0)),
        ),
        compiler_params=pltpu.CompilerParams(
            dimension_semantics=("parallel", "parallel"),
            vmem_limit_bytes=_VMEM_LIMIT_BYTES),
        cost_estimate=cost,
    )(x, w0, w1, w2, b)

    return out.reshape(B, H, W, C)


def msc_forward(x_nchw, weight, bias, **kwargs):
    """NCHW wrapper matching the PyTorch interface.
    NOTE: the two transposes below are full HBM read+write passes; keep the
    surrounding model NHWC and call msc_forward_nhwc directly to avoid them."""
    x_nhwc = jnp.transpose(x_nchw, (0, 2, 3, 1))
    out = msc_forward_nhwc(x_nhwc, weight, bias, **kwargs)
    return jnp.transpose(out, (0, 3, 1, 2))


def msc_reference(x, weight, bias):
    """Pure-JAX reference matching the PyTorch MSC forward (NCHW)."""
    B, C, H, W = x.shape
    p1 = jnp.max(x.reshape(B, C, H // 2, 2, W // 2, 2), axis=(3, 5))
    p2 = jnp.max(x.reshape(B, C, H // 4, 4, W // 4, 4), axis=(3, 5))
    x1 = jnp.repeat(jnp.repeat(p1, 2, axis=2), 2, axis=3)   # nearest interp
    x2 = jnp.repeat(jnp.repeat(p2, 4, axis=2), 4, axis=3)
    concat = jnp.concatenate([x, x1, x2], axis=1)            # (B, 3C, H, W)
    y = jnp.einsum("oc,bchw->bohw", weight, concat) + bias[None, :, None, None]
    return jnp.maximum(y, 0.0)


if __name__ == "__main__":
    B, C, H, W = 2, 4, 16, 16
    key = jax.random.PRNGKey(0)
    kx, kw, kb = jax.random.split(key, 3)

    x = jax.random.normal(kx, (B, C, H, W), dtype=jnp.float32)
    # Deterministic synthetic parameters for Conv2d(3C, C, kernel_size=1).
    weight = 0.1 * jax.random.normal(kw, (C, 3 * C), dtype=jnp.float32)
    bias = 0.1 * jax.random.normal(kb, (C,), dtype=jnp.float32)

    ref = msc_reference(x, weight, bias)

    # Exact (f32 pooling + f32 MXU) path — tight tolerance.
    out_f32 = jax.block_until_ready(msc_forward(x, weight, bias, use_bf16=False))
    assert out_f32.shape == (B, C, H, W), out_f32.shape
    if not bool(jnp.allclose(out_f32, ref, rtol=1e-5, atol=1e-5)):
        raise AssertionError("Pallas MSC kernel (f32 path) does not match reference")

    # Default fast path — bf16 activations end-to-end in kernel, f32 accumulate.
    out_bf16 = jax.block_until_ready(msc_forward(x, weight, bias))
    if not bool(jnp.allclose(out_bf16, ref, rtol=2e-2, atol=2e-2)):
        raise AssertionError("Pallas MSC kernel (bf16 path) does not match reference")

    # bf16 output writeback (halves output HBM traffic if downstream accepts it).
    out_bf16_out = jax.block_until_ready(
        msc_forward(x, weight, bias, out_dtype=jnp.bfloat16))
    assert out_bf16_out.dtype == jnp.bfloat16
    if not bool(jnp.allclose(out_bf16_out.astype(jnp.float32), ref,
                             rtol=5e-2, atol=5e-2)):
        raise AssertionError("Pallas MSC kernel (bf16 output) does not match reference")

    print("KERNEL_OK")
</pallas_src>

<mosaic_0001>
module attributes {stable_mosaic.version = 11 : i64} {
  func.func @_msc_kernel(%arg0: i32, %arg1: i32, %arg2: memref<1x128x4xf32, #tpu.memory_space<vmem>>, %arg3: memref<4x4xf32, #tpu.memory_space<vmem>>, %arg4: memref<4x4xf32, #tpu.memory_space<vmem>>, %arg5: memref<4x4xf32, #tpu.memory_space<vmem>>, %arg6: memref<1x4xf32, #tpu.memory_space<vmem>>, %arg7: memref<1x128x4xf32, #tpu.memory_space<vmem>>) attributes {dimension_semantics = [#tpu.dimension_semantics<parallel>, #tpu.dimension_semantics<parallel>], iteration_bounds = array<i64: 2, 2>, scalar_prefetch = 0 : i64, scratch_operands = 0 : i64, tpu.core_type = #tpu.core_type<tc>, window_params = [{transform_indices = @transform_0, window_bounds = array<i64: 1, 128, 4>}, {pipeline_mode = #tpu.pipeline_mode<synchronous>, transform_indices = @transform_1, window_bounds = array<i64: 4, 4>}, {pipeline_mode = #tpu.pipeline_mode<synchronous>, transform_indices = @transform_2, window_bounds = array<i64: 4, 4>}, {pipeline_mode = #tpu.pipeline_mode<synchronous>, transform_indices = @transform_3, window_bounds = array<i64: 4, 4>}, {pipeline_mode = #tpu.pipeline_mode<synchronous>, transform_indices = @transform_4, window_bounds = array<i64: 1, 4>}, {transform_indices = @transform_5, window_bounds = array<i64: 1, 128, 4>}]} {
    %c0 = arith.constant 0 : index
    %c0_0 = arith.constant 0 : index
    %c0_1 = arith.constant 0 : index
    %0 = vector.load %arg2[%c0, %c0_0, %c0_1] : memref<1x128x4xf32, #tpu.memory_space<vmem>>, vector<1x128x4xf32>
    %1 = vector.shape_cast %0 : vector<1x128x4xf32> to vector<128x4xf32>
    %2 = tpu.iota {dimensions = array<i32: 0>} : vector<128x1xi32>
    %c1_i32 = arith.constant 1 : i32
    %3 = vector.broadcast %c1_i32 : i32 to vector<128x1xi32>
    %4 = arith.andi %2, %3 : vector<128x1xi32>
    %c0_i32 = arith.constant 0 : i32
    %5 = vector.broadcast %c0_i32 : i32 to vector<128x1xi32>
    %6 = arith.cmpi eq, %4, %5 : vector<128x1xi32>
    %c3_i32 = arith.constant 3 : i32
    %7 = vector.broadcast %c3_i32 : i32 to vector<128x1xi32>
    %8 = arith.andi %2, %7 : vector<128x1xi32>
    %c2_i32 = arith.constant 2 : i32
    %9 = vector.broadcast %c2_i32 : i32 to vector<128x1xi32>
    %10 = arith.cmpi slt, %8, %9 : vector<128x1xi32>
    %c31_i32 = arith.constant 31 : i32
    %11 = vector.broadcast %c31_i32 : i32 to vector<128x1xi32>
    %12 = arith.andi %2, %11 : vector<128x1xi32>
    %c16_i32 = arith.constant 16 : i32
    %13 = vector.broadcast %c16_i32 : i32 to vector<128x1xi32>
    %14 = arith.cmpi slt, %12, %13 : vector<128x1xi32>
    %c63_i32 = arith.constant 63 : i32
    %15 = vector.broadcast %c63_i32 : i32 to vector<128x1xi32>
    %16 = arith.andi %2, %15 : vector<128x1xi32>
    %c32_i32 = arith.constant 32 : i32
    %17 = vector.broadcast %c32_i32 : i32 to vector<128x1xi32>
    %18 = arith.cmpi slt, %16, %17 : vector<128x1xi32>
    %c0_2 = arith.constant 0 : index
    %c0_3 = arith.constant 0 : index
    %19 = vector.load %arg3[%c0_2, %c0_3] : memref<4x4xf32, #tpu.memory_space<vmem>>, vector<4x4xf32>
    %cst = arith.constant dense<0.000000e+00> : vector<128x4xf32>
    %20 = tpu.matmul %1, %19, %cst {dimension_numbers = #tpu.dot_dimension_numbers<[1], [0], [0], [1], [0, 0, 1, 1], [], []>} : vector<128x4xf32>, vector<4x4xf32>, vector<128x4xf32> -> vector<128x4xf32>
    %c127_i32 = arith.constant 127 : i32
    %21 = tpu.dynamic_rotate %1 by %c127_i32 dim 0 : vector<128x4xf32>, i32 -> vector<128x4xf32>
    %c1_i32_4 = arith.constant 1 : i32
    %22 = tpu.dynamic_rotate %1 by %c1_i32_4 dim 0 : vector<128x4xf32>, i32 -> vector<128x4xf32>
    %23 = vector.shape_cast %6 : vector<128x1xi1> to vector<128x1xi1>
    %24 = vector.broadcast %23 : vector<128x1xi1> to vector<128x4xi1>
    %25 = arith.select %24, %21, %22 : vector<128x4xi1>, vector<128x4xf32>
    %26 = arith.maximumf %1, %25 : vector<128x4xf32>
    %c112_i32 = arith.constant 112 : i32
    %27 = tpu.dynamic_rotate %26 by %c112_i32 dim 0 : vector<128x4xf32>, i32 -> vector<128x4xf32>
    %c16_i32_5 = arith.constant 16 : i32
    %28 = tpu.dynamic_rotate %26 by %c16_i32_5 dim 0 : vector<128x4xf32>, i32 -> vector<128x4xf32>
    %29 = vector.shape_cast %14 : vector<128x1xi1> to vector<128x1xi1>
    %30 = vector.broadcast %29 : vector<128x1xi1> to vector<128x4xi1>
    %31 = arith.select %30, %27, %28 : vector<128x4xi1>, vector<128x4xf32>
    %32 = arith.maximumf %26, %31 : vector<128x4xf32>
    %c0_6 = arith.constant 0 : index
    %c0_7 = arith.constant 0 : index
    %33 = vector.load %arg4[%c0_6, %c0_7] : memref<4x4xf32, #tpu.memory_space<vmem>>, vector<4x4xf32>
    %cst_8 = arith.constant dense<0.000000e+00> : vector<128x4xf32>
    %34 = tpu.matmul %32, %33, %cst_8 {dimension_numbers = #tpu.dot_dimension_numbers<[1], [0], [0], [1], [0, 0, 1, 1], [], []>} : vector<128x4xf32>, vector<4x4xf32>, vector<128x4xf32> -> vector<128x4xf32>
    %35 = arith.addf %20, %34 : vector<128x4xf32>
    %c126_i32 = arith.constant 126 : i32
    %36 = tpu.dynamic_rotate %32 by %c126_i32 dim 0 : vector<128x4xf32>, i32 -> vector<128x4xf32>
    %c2_i32_9 = arith.constant 2 : i32
    %37 = tpu.dynamic_rotate %32 by %c2_i32_9 dim 0 : vector<128x4xf32>, i32 -> vector<128x4xf32>
    %38 = vector.shape_cast %10 : vector<128x1xi1> to vector<128x1xi1>
    %39 = vector.broadcast %38 : vector<128x1xi1> to vector<128x4xi1>
    %40 = arith.select %39, %36, %37 : vector<128x4xi1>, vector<128x4xf32>
    %41 = arith.maximumf %32, %40 : vector<128x4xf32>
    %c96_i32 = arith.constant 96 : i32
    %42 = tpu.dynamic_rotate %41 by %c96_i32 dim 0 : vector<128x4xf32>, i32 -> vector<128x4xf32>
    %c32_i32_10 = arith.constant 32 : i32
    %43 = tpu.dynamic_rotate %41 by %c32_i32_10 dim 0 : vector<128x4xf32>, i32 -> vector<128x4xf32>
    %44 = vector.shape_cast %18 : vector<128x1xi1> to vector<128x1xi1>
    %45 = vector.broadcast %44 : vector<128x1xi1> to vector<128x4xi1>
    %46 = arith.select %45, %42, %43 : vector<128x4xi1>, vector<128x4xf32>
    %47 = arith.maximumf %41, %46 : vector<128x4xf32>
    %c0_11 = arith.constant 0 : index
    %c0_12 = arith.constant 0 : index
    %48 = vector.load %arg5[%c0_11, %c0_12] : memref<4x4xf32, #tpu.memory_space<vmem>>, vector<4x4xf32>
    %cst_13 = arith.constant dense<0.000000e+00> : vector<128x4xf32>
    %49 = tpu.matmul %47, %48, %cst_13 {dimension_numbers = #tpu.dot_dimension_numbers<[1], [0], [0], [1], [0, 0, 1, 1], [], []>} : vector<128x4xf32>, vector<4x4xf32>, vector<128x4xf32> -> vector<128x4xf32>
    %50 = arith.addf %35, %49 : vector<128x4xf32>
    %c0_14 = arith.constant 0 : index
    %c0_15 = arith.constant 0 : index
    %51 = vector.load %arg6[%c0_14, %c0_15] : memref<1x4xf32, #tpu.memory_space<vmem>>, vector<1x4xf32>
    %52 = vector.broadcast %51 : vector<1x4xf32> to vector<128x4xf32>
    %53 = arith.addf %50, %52 : vector<128x4xf32>
    %cst_16 = arith.constant 0.000000e+00 : f32
    %54 = vector.broadcast %cst_16 : f32 to vector<128x4xf32>
    %55 = arith.maximumf %53, %54 : vector<128x4xf32>
    %c0_17 = arith.constant 0 : index
    %c0_18 = arith.constant 0 : index
    %c0_19 = arith.constant 0 : index
    %56 = vector.load %arg7[%c0_17, %c0_18, %c0_19] : memref<1x128x4xf32, #tpu.memory_space<vmem>>, vector<1x128x4xf32>
    %57 = vector.shape_cast %56 : vector<1x128x4xf32> to vector<128x4xf32>
    %58 = vector.shape_cast %55 : vector<128x4xf32> to vector<1x128x4xf32>
    tpu.vector_store %arg7[%c0_17, %c0_18, %c0_19], %58 {strides = array<i32>} : memref<1x128x4xf32, #tpu.memory_space<vmem>>, vector<1x128x4xf32>,
    return
  }
  func.func @transform_0(%arg0: i32, %arg1: i32) -> (i32, i32, i32) {
    %c0_i32 = arith.constant 0 : i32
    %c0_i32_0 = arith.constant 0 : i32
    return %arg0, %arg1, %c0_i32 : i32, i32, i32
  }
  func.func @transform_1(%arg0: i32, %arg1: i32) -> (i32, i32) {
    %c0_i32 = arith.constant 0 : i32
    %c0_i32_0 = arith.constant 0 : i32
    %c0_i32_1 = arith.constant 0 : i32
    return %c0_i32, %c0_i32_0 : i32, i32
  }
  func.func @transform_2(%arg0: i32, %arg1: i32) -> (i32, i32) {
    %c0_i32 = arith.constant 0 : i32
    %c0_i32_0 = arith.constant 0 : i32
    %c0_i32_1 = arith.constant 0 : i32
    return %c0_i32, %c0_i32_0 : i32, i32
  }
  func.func @transform_3(%arg0: i32, %arg1: i32) -> (i32, i32) {
    %c0_i32 = arith.constant 0 : i32
    %c0_i32_0 = arith.constant 0 : i32
    %c0_i32_1 = arith.constant 0 : i32
    return %c0_i32, %c0_i32_0 : i32, i32
  }
  func.func @transform_4(%arg0: i32, %arg1: i32) -> (i32, i32) {
    %c0_i32 = arith.constant 0 : i32
    %c0_i32_0 = arith.constant 0 : i32
    %c0_i32_1 = arith.constant 0 : i32
    return %c0_i32, %c0_i32_0 : i32, i32
  }
  func.func @transform_5(%arg0: i32, %arg1: i32) -> (i32, i32, i32) {
    %c0_i32 = arith.constant 0 : i32
    %c0_i32_0 = arith.constant 0 : i32
    return %arg0, %arg1, %c0_i32 : i32, i32, i32
  }
}

</mosaic_0001>

<llo_original>
// kernel: tpu_custom_call.1
$region0: #{tpu_custom_call.1}
  #allocation0 [shape = 'u32[]', space=smem, size = 0x4, offset = 0x4, fixed_abs, tag = 'smem constant byte address 0x4 - core index']
  #allocation1 [shape = 'u32[144,128]{1,0:T(1,128)}', space=vmem, size = 0x12000, scoped, tag = 'internal scratch']
  %s0 = inlined_call_operand.vmem [shape: f32[2,256,4], index: 0, kind: input, shape index: {}]
  %s1 = inlined_call_operand.vmem [shape: f32[4,4], index: 1, kind: input, shape index: {}]
  %s2 = inlined_call_operand.vmem [shape: f32[4,4], index: 2, kind: input, shape index: {}]
  %s3 = inlined_call_operand.vmem [shape: f32[4,4], index: 3, kind: input, shape index: {}]
  %s4 = inlined_call_operand.vmem [shape: f32[1,4], index: 4, kind: input, shape index: {}]
  %s5 = inlined_call_operand.vmem [shape: f32[2,256,4], index: 5, kind: output, shape index: {}]
  %s6 = sld [smem:[#allocation0]]
  $region53: #{tpu_custom_call.1} parent=0
    _
  %s8 = ssub.s32 1, %s6
  %s9 = scalar_select 0, %s8, %s6
  loop: start=0, step=1, limit=6
  $region2: #{tpu_custom_call.1} parent=0 // loop_pre_header
    _
  $region3: #{tpu_custom_call.1} parent=0 // loop_header
    %s11 = sphi 0, %s15
    %p12 = scmp.ge.s32.totalorder %s11, 6
    %s18 = sphi 0, %s30
    %s19 = sphi 0, %s26
    %s20 = sphi 0, %s18
    %s21 = sphi 0, %s19
    %s22 = sphi 0, %s20
    %s23 = sphi 0, %s21
    %s35 = sphi 0, %s37
    %s38 = sphi 0, %s35
    %s39 = sphi 0, %s38
    %s55 = sphi 0, %s39
    %s59 = sphi 0, %s59
    %s61 = sphi 0, %s59
    %s62 = sphi 0, %s61
    %s76 = sphi 0, %s62
    %s80 = sphi 0, %s80
    %s82 = sphi 0, %s80
    %s83 = sphi 0, %s82
    %s97 = sphi 0, %s83
    %s101 = sphi 0, %s101
    %s103 = sphi 0, %s101
    %s104 = sphi 0, %s103
    %s118 = sphi 0, %s104
    %s122 = sphi 0, %s122
    %s124 = sphi 0, %s122
    %s125 = sphi 0, %s124
    %s139 = sphi 0, %s125
    %s147 = sphi 0, %s149
    %s150 = sphi 0, %s147
    %s151 = sphi 0, %s150
    %s167 = sphi 0, %s151
  $region4: #{tpu_custom_call.1} parent=0 // loop_header_branch
    %14 = sbr.rel (%p12) target = $region8
  $region5: #{tpu_custom_call.1} parent=0 // loop_body
    %s16 = ssub.s32 %s11, 1
    %s17 = ssub.s32 %s11, 2
    %s24 = sadd.s32 1, %s19
    %p25 = scmp.ge.s32.totalorder %s24, 2
    %s26 = scalar_select %p25, 0, %s24
    %s27 = sadd.s32 1, %s18
    %s28 = scalar_select %p25, %s27, %s18
    %p29 = scmp.ge.s32.totalorder %s28, 2
    %s30 = scalar_select %p29, 0, %s28
    %s31 = ssub.s32 %s18, %s30
    %s32 = ssub.s32 %s19, %s26
    %s33 = sor.u32 %s31, %s32
    %p34 = scmp.eq.s32.totalorder %s33, 0
    %s36 = sadd.s32 %s35, 1
    %s37 = scalar_select %p34, %s35, %s36
    %p40 = pneg %p34
    %p41 = scmp.eq.s32.totalorder %s11, 3
    %p42 = por %p40, %p41
    %p43 = scmp.ne.s32.totalorder %s35, %s38
    %p44 = scmp.eq.s32.totalorder %s11, 0
    %p45 = por %p43, %p44
    %p46 = scmp.ne.s32.totalorder %s35, %s38
    %p47 = scmp.eq.s32.totalorder %s16, 3
    %p48 = por %p46, %p47
    %p49 = scmp.ne.s32.totalorder %s38, %s39
    %p50 = scmp.eq.s32.totalorder %s16, 0
    %p51 = por %p49, %p50
    %p52 = scmp.ne.s32.totalorder %s38, %s39
    %p53 = scmp.eq.s32.totalorder %s17, 3
    %p54 = por %p52, %p53
    %p56 = scmp.ne.s32.totalorder %s39, %s55
    %p57 = scmp.eq.s32.totalorder %s17, 0
    %p58 = por %p56, %p57
    %s60 = sadd.s32 %s59, 1
    %p63 = scmp.eq.s32.totalorder %s11, 3
    %p64 = scmp.ne.s32.totalorder %s59, %s61
    %p65 = scmp.eq.s32.totalorder %s11, 0
    %p66 = por %p64, %p65
    %p67 = scmp.ne.s32.totalorder %s59, %s61
    %p68 = scmp.eq.s32.totalorder %s16, 3
    %p69 = por %p67, %p68
    %p70 = scmp.ne.s32.totalorder %s61, %s62
    %p71 = scmp.eq.s32.totalorder %s16, 0
    %p72 = por %p70, %p71
    %p73 = scmp.ne.s32.totalorder %s61, %s62
    %p74 = scmp.eq.s32.totalorder %s17, 3
    %p75 = por %p73, %p74
    %p77 = scmp.ne.s32.totalorder %s62, %s76
    %p78 = scmp.eq.s32.totalorder %s17, 0
    %p79 = por %p77, %p78
    %s81 = sadd.s32 %s80, 1
    %p84 = scmp.eq.s32.totalorder %s11, 3
    %p85 = scmp.ne.s32.totalorder %s80, %s82
    %p86 = scmp.eq.s32.totalorder %s11, 0
    %p87 = por %p85, %p86
    %p88 = scmp.ne.s32.totalorder %s80, %s82
    %p89 = scmp.eq.s32.totalorder %s16, 3
    %p90 = por %p88, %p89
    %p91 = scmp.ne.s32.totalorder %s82, %s83
    %p92 = scmp.eq.s32.totalorder %s16, 0
    %p93 = por %p91, %p92
    %p94 = scmp.ne.s32.totalorder %s82, %s83
    %p95 = scmp.eq.s32.totalorder %s17, 3
    %p96 = por %p94, %p95
    %p98 = scmp.ne.s32.totalorder %s83, %s97
    %p99 = scmp.eq.s32.totalorder %s17, 0
    %p100 = por %p98, %p99
    %s102 = sadd.s32 %s101, 1
    %p105 = scmp.eq.s32.totalorder %s11, 3
    %p106 = scmp.ne.s32.totalorder %s101, %s103
    %p107 = scmp.eq.s32.totalorder %s11, 0
    %p108 = por %p106, %p107
    %p109 = scmp.ne.s32.totalorder %s101, %s103
    %p110 = scmp.eq.s32.totalorder %s16, 3
    %p111 = por %p109, %p110
    %p112 = scmp.ne.s32.totalorder %s103, %s104
    %p113 = scmp.eq.s32.totalorder %s16, 0
    %p114 = por %p112, %p113
    %p115 = scmp.ne.s32.totalorder %s103, %s104
    %p116 = scmp.eq.s32.totalorder %s17, 3
    %p117 = por %p115, %p116
    %p119 = scmp.ne.s32.totalorder %s104, %s118
    %p120 = scmp.eq.s32.totalorder %s17, 0
    %p121 = por %p119, %p120
    %s123 = sadd.s32 %s122, 1
    %p126 = scmp.eq.s32.totalorder %s11, 3
    %p127 = scmp.ne.s32.totalorder %s122, %s124
    %p128 = scmp.eq.s32.totalorder %s11, 0
    %p129 = por %p127, %p128
    %p130 = scmp.ne.s32.totalorder %s122, %s124
    %p131 = scmp.eq.s32.totalorder %s16, 3
    %p132 = por %p130, %p131
    %p133 = scmp.ne.s32.totalorder %s124, %s125
    %p134 = scmp.eq.s32.totalorder %s16, 0
    %p135 = por %p133, %p134
    %p136 = scmp.ne.s32.totalorder %s124, %s125
    %p137 = scmp.eq.s32.totalorder %s17, 3
    %p138 = por %p136, %p137
    %p140 = scmp.ne.s32.totalorder %s125, %s139
    %p141 = scmp.eq.s32.totalorder %s17, 0
    %p142 = por %p140, %p141
    %s143 = ssub.s32 %s18, %s30
    %s144 = ssub.s32 %s19, %s26
    %s145 = sor.u32 %s143, %s144
    %p146 = scmp.eq.s32.totalorder %s145, 0
    %s148 = sadd.s32 %s147, 1
    %s149 = scalar_select %p146, %s147, %s148
    %p152 = pneg %p146
    %p153 = scmp.eq.s32.totalorder %s11, 3
    %p154 = por %p152, %p153
    %p155 = scmp.ne.s32.totalorder %s147, %s150
    %p156 = scmp.eq.s32.totalorder %s11, 0
    %p157 = por %p155, %p156
    %p158 = scmp.ne.s32.totalorder %s147, %s150
    %p159 = scmp.eq.s32.totalorder %s16, 3
    %p160 = por %p158, %p159
    %p161 = scmp.ne.s32.totalorder %s150, %s151
    %p162 = scmp.eq.s32.totalorder %s16, 0
    %p163 = por %p161, %p162
    %p164 = scmp.ne.s32.totalorder %s150, %s151
    %p165 = scmp.eq.s32.totalorder %s17, 3
    %p166 = por %p164, %p165
    %p168 = scmp.ne.s32.totalorder %s151, %s167
    %p169 = scmp.eq.s32.totalorder %s17, 0
    %p170 = por %p168, %p169
    %p171 = scmp.le.s32.totalorder 1, %s11
    %p172 = scmp.lt.s32.totalorder %s11, 5
    %p173 = pnand %p171, %p172
    %p174 = pneg %p173
    // Predicated region
    $region9: #{tpu_custom_call.1} parent=5 // pred_check
      _
    $region10: #{tpu_custom_call.1} parent=5 // pred_check_branch
      %176 = sbr.rel (%p173) target = $region12
    $region11: #{tpu_custom_call.1} parent=5 // pred_region
      %s177 = ssub.s32 %s11, 1
      // Predicated region
      $region13: #{tpu_custom_call.1} parent=11 // pred_check
        %p178 = pneg %p72
      $region14: #{tpu_custom_call.1} parent=11 // pred_check_branch
        %180 = sbr.rel (%p178) target = $region16
      $region15: #{tpu_custom_call.1} parent=11 // pred_region
        _
      $region16: #{tpu_custom_call.1} parent=11 // pred_fallthru
        _
      // Predicated region
      $region17: #{tpu_custom_call.1} parent=11 // pred_check
        %p181 = pneg %p93
      $region18: #{tpu_custom_call.1} parent=11 // pred_check_branch
        %183 = sbr.rel (%p181) target = $region20
      $region19: #{tpu_custom_call.1} parent=11 // pred_region
        _
      $region20: #{tpu_custom_call.1} parent=11 // pred_fallthru
        _
      // Predicated region
      $region21: #{tpu_custom_call.1} parent=11 // pred_check
        %p184 = pneg %p114
      $region22: #{tpu_custom_call.1} parent=11 // pred_check_branch
        %186 = sbr.rel (%p184) target = $region24
      $region23: #{tpu_custom_call.1} parent=11 // pred_region
        _
      $region24: #{tpu_custom_call.1} parent=11 // pred_fallthru
        _
      // Predicated region
      $region25: #{tpu_custom_call.1} parent=11 // pred_check
        %p187 = pneg %p135
      $region26: #{tpu_custom_call.1} parent=11 // pred_check_branch
        %189 = sbr.rel (%p187) target = $region28
      $region27: #{tpu_custom_call.1} parent=11 // pred_region
        _
      $region28: #{tpu_custom_call.1} parent=11 // pred_fallthru
        _
    $region12: #{tpu_custom_call.1} parent=5 // pred_fallthru
      _
    %p190 = scmp.lt.s32.totalorder %s11, 4
    // Predicated region
    $region29: #{tpu_custom_call.1} parent=5 // pred_check
      %p191 = pneg %p190
    $region30: #{tpu_custom_call.1} parent=5 // pred_check_branch
      %193 = sbr.rel (%p191) target = $region32
    $region31: #{tpu_custom_call.1} parent=5 // pred_region
      // Predicated region
      $region33: #{tpu_custom_call.1} parent=31 // pred_check
        %p194 = pneg %p45
      $region34: #{tpu_custom_call.1} parent=31 // pred_check_branch
        %196 = sbr.rel (%p194) target = $region36
      $region35: #{tpu_custom_call.1} parent=31 // pred_region
        %s197 = smul.u32 16, %s19
        %p198 = scmp.lt.s32.totalorder %s18, 1
        %s199 = scalar_select %p198, %s18, 1
        %p200 = scmp.lt.s32.totalorder %s197, 31
        %s201 = scalar_select %p200, %s197, 31
        %s202 = smul.addr %s199, 32
        %s203 = sadd.s32 %s201, %s202
        %s204 = smul.addr %s203, 8
        %s205 = scalar_lea.vmem %s0, %s204
        %s206 = smul.u32 16, %s19
      $region36: #{tpu_custom_call.1} parent=31 // pred_fallthru
        _
    $region32: #{tpu_custom_call.1} parent=5 // pred_fallthru
      _
    %p207 = scmp.le.s32.totalorder 1, %s11
    %p208 = scmp.lt.s32.totalorder %s11, 5
    %p209 = pnand %p207, %p208
    %p210 = pneg %p209
    // Predicated region
    $region37: #{tpu_custom_call.1} parent=5 // pred_check
      _
    $region38: #{tpu_custom_call.1} parent=5 // pred_check_branch
      %212 = sbr.rel (%p209) target = $region40
    $region39: #{tpu_custom_call.1} parent=5 // pred_region
      %s213 = ssub.s32 %s11, 1
      %s214 = smul.u32 16, %s21
      %p215 = scmp.lt.s32.totalorder %s20, 1
      %s216 = scalar_select %p215, %s20, 1
      %p217 = scmp.lt.s32.totalorder %s214, 31
      %s218 = scalar_select %p217, %s214, 31
      %s219 = smul.addr %s216, 32
      %s220 = sadd.s32 %s218, %s219
      %s221 = smul.addr %s220, 8
      %s222 = scalar_lea.vmem %s0, %s221
      %p223 = pneg %p51
      %p224 = pneg %p48
      %p225 = pneg %p72
      %p226 = pneg %p69
      %p227 = pneg %p93
      %p228 = pneg %p90
      %p229 = pneg %p114
      %p230 = pneg %p111
      %p231 = pneg %p135
      %p232 = pneg %p132
      %p233 = pneg %p163
      %p234 = pneg %p160
      %s235 = smul.u32 16, %s21
      %p236 = scmp.lt.s32.totalorder %s20, 1
      %s237 = scalar_select %p236, %s20, 1
      %p238 = scmp.lt.s32.totalorder %s235, 31
      %s239 = scalar_select %p238, %s235, 31
      %s240 = smul.addr %s237, 32
      %s241 = sadd.s32 %s239, %s240
      %s242 = smul.addr %s241, 8
      %s243 = scalar_lea.vmem %s5, %s242
      %s244 = smul.u32 16, %s21
      %p245 = scmp.lt.s32.totalorder %s20, 1
      %s246 = scalar_select %p245, %s20, 1
      %p247 = scmp.lt.s32.totalorder %s244, 31
      %s248 = scalar_select %p247, %s244, 31
      %s249 = smul.addr %s246, 32
      %s250 = sadd.s32 %s248, %s249
      %s251 = smul.addr %s250, 8
      %s252 = scalar_lea.vmem %s0, %s251
      %s253 = smul.u32 16, %s21
      %s254 = smul.u32 16, %s21
      %p255 = scmp.lt.s32.totalorder %s20, 1
      %s256 = scalar_select %p255, %s20, 1
      %p257 = scmp.lt.s32.totalorder %s254, 31
      %s258 = scalar_select %p257, %s254, 31
      %s259 = smul.addr %s256, 32
      %s260 = sadd.s32 %s258, %s259
      %s261 = smul.addr %s260, 8
      %s262 = scalar_lea.vmem %s5, %s261
      %s263 = smul.u32 16, %s21
      %v264 = vld [vmem:[%s252] sm:$0xff]
      %v265 = vld [vmem:[%s252 + $0x8] sm:$0xff]
      %v266 = vld [vmem:[%s252 + $0x10] sm:$0xff]
      %v267 = vld [vmem:[%s252 + $0x18] sm:$0xff]
      %v268 = vld [vmem:[%s252 + $0x20] sm:$0xff]
      %v269 = vld [vmem:[%s252 + $0x28] sm:$0xff]
      %v270 = vld [vmem:[%s252 + $0x30] sm:$0xff]
      %v271 = vld [vmem:[%s252 + $0x38] sm:$0xff]
      %v272 = vld [vmem:[%s252 + $0x40] sm:$0xff]
      %v273 = vld [vmem:[%s252 + $0x48] sm:$0xff]
      %v274 = vld [vmem:[%s252 + $0x50] sm:$0xff]
      %v275 = vld [vmem:[%s252 + $0x58] sm:$0xff]
      %v276 = vld [vmem:[%s252 + $0x60] sm:$0xff]
      %v277 = vld [vmem:[%s252 + $0x68] sm:$0xff]
      %v278 = vld [vmem:[%s252 + $0x70] sm:$0xff]
      %v279 = vld [vmem:[%s252 + $0x78] sm:$0xff]
      %v280 = vlaneseq
      %v281 = vshrl.u32 %v280, 7
      %v282 = vadd.s32 %v281, 8
      %v283 = vadd.s32 %v281, 16
      %v284 = vadd.s32 %v281, 24
      %v285 = vadd.s32 %v281, 32
      %v286 = vadd.s32 %v281, 40
      %v287 = vadd.s32 %v281, 48
      %v288 = vadd.s32 %v281, 56
      %v289 = vadd.s32 %v281, 64
      %v290 = vadd.s32 %v281, 72
      %v291 = vadd.s32 %v281, 80
      %v292 = vadd.s32 %v281, 88
      %v293 = vadd.s32 %v281, 96
      %v294 = vadd.s32 %v281, 104
      %v295 = vadd.s32 %v281, 112
      %v296 = vadd.s32 %v281, 120
      %v297 = vand.u32 %v281, 1
      %v298 = vand.u32 %v282, 1
      %v299 = vand.u32 %v283, 1
      %v300 = vand.u32 %v284, 1
      %v301 = vand.u32 %v285, 1
      %v302 = vand.u32 %v286, 1
      %v303 = vand.u32 %v287, 1
      %v304 = vand.u32 %v288, 1
      %v305 = vand.u32 %v289, 1
      %v306 = vand.u32 %v290, 1
      %v307 = vand.u32 %v291, 1
      %v308 = vand.u32 %v292, 1
      %v309 = vand.u32 %v293, 1
      %v310 = vand.u32 %v294, 1
      %v311 = vand.u32 %v295, 1
      %v312 = vand.u32 %v296, 1
      %vm313 = vcmp.eq.s32.totalorder %v297, 0
      %vm314 = vcmp.eq.s32.totalorder %v298, 0
      %vm315 = vcmp.eq.s32.totalorder %v299, 0
      %vm316 = vcmp.eq.s32.totalorder %v300, 0
      %vm317 = vcmp.eq.s32.totalorder %v301, 0
      %vm318 = vcmp.eq.s32.totalorder %v302, 0
      %vm319 = vcmp.eq.s32.totalorder %v303, 0
      %vm320 = vcmp.eq.s32.totalorder %v304, 0
      %vm321 = vcmp.eq.s32.totalorder %v305, 0
      %vm322 = vcmp.eq.s32.totalorder %v306, 0
      %vm323 = vcmp.eq.s32.totalorder %v307, 0
      %vm324 = vcmp.eq.s32.totalorder %v308, 0
      %vm325 = vcmp.eq.s32.totalorder %v309, 0
      %vm326 = vcmp.eq.s32.totalorder %v310, 0
      %vm327 = vcmp.eq.s32.totalorder %v311, 0
      %vm328 = vcmp.eq.s32.totalorder %v312, 0
      %v329 = vand.u32 %v281, 3
      %v330 = vand.u32 %v282, 3
      %v331 = vand.u32 %v283, 3
      %v332 = vand.u32 %v284, 3
      %v333 = vand.u32 %v285, 3
      %v334 = vand.u32 %v286, 3
      %v335 = vand.u32 %v287, 3
      %v336 = vand.u32 %v288, 3
      %v337 = vand.u32 %v289, 3
      %v338 = vand.u32 %v290, 3
      %v339 = vand.u32 %v291, 3
      %v340 = vand.u32 %v292, 3
      %v341 = vand.u32 %v293, 3
      %v342 = vand.u32 %v294, 3
      %v343 = vand.u32 %v295, 3
      %v344 = vand.u32 %v296, 3
      %vm345 = vcmp.lt.s32.totalorder %v329, 2
      %vm346 = vcmp.lt.s32.totalorder %v330, 2
      %vm347 = vcmp.lt.s32.totalorder %v331, 2
      %vm348 = vcmp.lt.s32.totalorder %v332, 2
      %vm349 = vcmp.lt.s32.totalorder %v333, 2
      %vm350 = vcmp.lt.s32.totalorder %v334, 2
      %vm351 = vcmp.lt.s32.totalorder %v335, 2
      %vm352 = vcmp.lt.s32.totalorder %v336, 2
      %vm353 = vcmp.lt.s32.totalorder %v337, 2
      %vm354 = vcmp.lt.s32.totalorder %v338, 2
      %vm355 = vcmp.lt.s32.totalorder %v339, 2
      %vm356 = vcmp.lt.s32.totalorder %v340, 2
      %vm357 = vcmp.lt.s32.totalorder %v341, 2
      %vm358 = vcmp.lt.s32.totalorder %v342, 2
      %vm359 = vcmp.lt.s32.totalorder %v343, 2
      %vm360 = vcmp.lt.s32.totalorder %v344, 2
      %v361 = vand.u32 %v281, 31
      %v362 = vand.u32 %v282, 31
      %v363 = vand.u32 %v283, 31
      %v364 = vand.u32 %v284, 31
      %v365 = vand.u32 %v285, 31
      %v366 = vand.u32 %v286, 31
      %v367 = vand.u32 %v287, 31
      %v368 = vand.u32 %v288, 31
      %v369 = vand.u32 %v289, 31
      %v370 = vand.u32 %v290, 31
      %v371 = vand.u32 %v291, 31
      %v372 = vand.u32 %v292, 31
      %v373 = vand.u32 %v293, 31
      %v374 = vand.u32 %v294, 31
      %v375 = vand.u32 %v295, 31
      %v376 = vand.u32 %v296, 31
      %vm377 = vcmp.lt.s32.totalorder %v361, 16
      %vm378 = vcmp.lt.s32.totalorder %v362, 16
      %vm379 = vcmp.lt.s32.totalorder %v363, 16
      %vm380 = vcmp.lt.s32.totalorder %v364, 16
      %vm381 = vcmp.lt.s32.totalorder %v365, 16
      %vm382 = vcmp.lt.s32.totalorder %v366, 16
      %vm383 = vcmp.lt.s32.totalorder %v367, 16
      %vm384 = vcmp.lt.s32.totalorder %v368, 16
      %vm385 = vcmp.lt.s32.totalorder %v369, 16
      %vm386 = vcmp.lt.s32.totalorder %v370, 16
      %vm387 = vcmp.lt.s32.totalorder %v371, 16
      %vm388 = vcmp.lt.s32.totalorder %v372, 16
      %vm389 = vcmp.lt.s32.totalorder %v373, 16
      %vm390 = vcmp.lt.s32.totalorder %v374, 16
      %vm391 = vcmp.lt.s32.totalorder %v375, 16
      %vm392 = vcmp.lt.s32.totalorder %v376, 16
      %v393 = vand.u32 %v281, 63
      %v394 = vand.u32 %v282, 63
      %v395 = vand.u32 %v283, 63
      %v396 = vand.u32 %v284, 63
      %v397 = vand.u32 %v285, 63
      %v398 = vand.u32 %v286, 63
      %v399 = vand.u32 %v287, 63
      %v400 = vand.u32 %v288, 63
      %v401 = vand.u32 %v289, 63
      %v402 = vand.u32 %v290, 63
      %v403 = vand.u32 %v291, 63
      %v404 = vand.u32 %v292, 63
      %v405 = vand.u32 %v293, 63
      %v406 = vand.u32 %v294, 63
      %v407 = vand.u32 %v295, 63
      %v408 = vand.u32 %v296, 63
      %vm409 = vcmp.lt.s32.totalorder %v393, 32
      %vm410 = vcmp.lt.s32.totalorder %v394, 32
      %vm411 = vcmp.lt.s32.totalorder %v395, 32
      %vm412 = vcmp.lt.s32.totalorder %v396, 32
      %vm413 = vcmp.lt.s32.totalorder %v397, 32
      %vm414 = vcmp.lt.s32.totalorder %v398, 32
      %vm415 = vcmp.lt.s32.totalorder %v399, 32
      %vm416 = vcmp.lt.s32.totalorder %v400, 32
      %vm417 = vcmp.lt.s32.totalorder %v401, 32
      %vm418 = vcmp.lt.s32.totalorder %v402, 32
      %vm419 = vcmp.lt.s32.totalorder %v403, 32
      %vm420 = vcmp.lt.s32.totalorder %v404, 32
      %vm421 = vcmp.lt.s32.totalorder %v405, 32
      %vm422 = vcmp.lt.s32.totalorder %v406, 32
      %vm423 = vcmp.lt.s32.totalorder %v407, 32
      %vm424 = vcmp.lt.s32.totalorder %v408, 32
      %v425 = vld [vmem:[%s1] sm:$0xf]
      %v426 = vrot.slane %v264, 1
      %v427 = vrot.slane %v265, 1
      %v428 = vrot.slane %v266, 1
      %v429 = vrot.slane %v267, 1
      %v430 = vrot.slane %v268, 1
      %v431 = vrot.slane %v269, 1
      %v432 = vrot.slane %v270, 1
      %v433 = vrot.slane %v271, 1
      %v434 = vrot.slane %v272, 1
      %v435 = vrot.slane %v273, 1
      %v436 = vrot.slane %v274, 1
      %v437 = vrot.slane %v275, 1
      %v438 = vrot.slane %v276, 1
      %v439 = vrot.slane %v277, 1
      %v440 = vrot.slane %v278, 1
      %v441 = vrot.slane %v279, 1
      %vm442 = vcmp.lt.s32.totalorder %v281, 7
      %v443 = vsel %vm442, %v440, %v441
      %v444 = vsel %vm442, %v439, %v440
      %v445 = vsel %vm442, %v438, %v439
      %v446 = vsel %vm442, %v437, %v438
      %v447 = vsel %vm442, %v436, %v437
      %v448 = vsel %vm442, %v435, %v436
      %v449 = vsel %vm442, %v434, %v435
      %v450 = vsel %vm442, %v433, %v434
      %v451 = vsel %vm442, %v432, %v433
      %v452 = vsel %vm442, %v431, %v432
      %v453 = vsel %vm442, %v430, %v431
      %v454 = vsel %vm442, %v429, %v430
      %v455 = vsel %vm442, %v428, %v429
      %v456 = vsel %vm442, %v427, %v428
      %v457 = vsel %vm442, %v426, %v427
      %v458 = vsel %vm442, %v441, %v426
      %v459 = vrot.slane %v264, 7
      %v460 = vrot.slane %v265, 7
      %v461 = vrot.slane %v266, 7
      %v462 = vrot.slane %v267, 7
      %v463 = vrot.slane %v268, 7
      %v464 = vrot.slane %v269, 7
      %v465 = vrot.slane %v270, 7
      %v466 = vrot.slane %v271, 7
      %v467 = vrot.slane %v272, 7
      %v468 = vrot.slane %v273, 7
      %v469 = vrot.slane %v274, 7
      %v470 = vrot.slane %v275, 7
      %v471 = vrot.slane %v276, 7
      %v472 = vrot.slane %v277, 7
      %v473 = vrot.slane %v278, 7
      %v474 = vrot.slane %v279, 7
      %vm475 = vcmp.lt.s32.totalorder %v281, 1
      %v476 = vsel %vm475, %v473, %v474
      %v477 = vsel %vm475, %v472, %v473
      %v478 = vsel %vm475, %v471, %v472
      %v479 = vsel %vm475, %v470, %v471
      %v480 = vsel %vm475, %v469, %v470
      %v481 = vsel %vm475, %v468, %v469
      %v482 = vsel %vm475, %v467, %v468
      %v483 = vsel %vm475, %v466, %v467
      %v484 = vsel %vm475, %v465, %v466
      %v485 = vsel %vm475, %v464, %v465
      %v486 = vsel %vm475, %v463, %v464
      %v487 = vsel %vm475, %v462, %v463
      %v488 = vsel %vm475, %v461, %v462
      %v489 = vsel %vm475, %v460, %v461
      %v490 = vsel %vm475, %v459, %v460
      %v491 = vsel %vm475, %v474, %v459
      %v492 = vsel %vm313, 1, 0
      %v493 = vsel %vm314, 1, 0
      %v494 = vsel %vm315, 1, 0
      %v495 = vsel %vm316, 1, 0
      %v496 = vsel %vm317, 1, 0
      %v497 = vsel %vm318, 1, 0
      %v498 = vsel %vm319, 1, 0
      %v499 = vsel %vm320, 1, 0
      %v500 = vsel %vm321, 1, 0
      %v501 = vsel %vm322, 1, 0
      %v502 = vsel %vm323, 1, 0
      %v503 = vsel %vm324, 1, 0
      %v504 = vsel %vm325, 1, 0
      %v505 = vsel %vm326, 1, 0
      %v506 = vsel %vm327, 1, 0
      %v507 = vsel %vm328, 1, 0
      %vm508 = vcmp.eq.s32.totalorder %v492, 1
      %vm509 = vcmp.eq.s32.totalorder %v493, 1
      %vm510 = vcmp.eq.s32.totalorder %v494, 1
      %vm511 = vcmp.eq.s32.totalorder %v495, 1
      %vm512 = vcmp.eq.s32.totalorder %v496, 1
      %vm513 = vcmp.eq.s32.totalorder %v497, 1
      %vm514 = vcmp.eq.s32.totalorder %v498, 1
      %vm515 = vcmp.eq.s32.totalorder %v499, 1
      %vm516 = vcmp.eq.s32.totalorder %v500, 1
      %vm517 = vcmp.eq.s32.totalorder %v501, 1
      %vm518 = vcmp.eq.s32.totalorder %v502, 1
      %vm519 = vcmp.eq.s32.totalorder %v503, 1
      %vm520 = vcmp.eq.s32.totalorder %v504, 1
      %vm521 = vcmp.eq.s32.totalorder %v505, 1
      %vm522 = vcmp.eq.s32.totalorder %v506, 1
      %vm523 = vcmp.eq.s32.totalorder %v507, 1
      %v524 = vsel %vm508, %v457, %v491
      %v525 = vsel %vm509, %v456, %v490
      %v526 = vsel %vm510, %v455, %v489
      %v527 = vsel %vm511, %v454, %v488
      %v528 = vsel %vm512, %v453, %v487
      %v529 = vsel %vm513, %v452, %v486
      %v530 = vsel %vm514, %v451, %v485
      %v531 = vsel %vm515, %v450, %v484
      %v532 = vsel %vm516, %v449, %v483
      %v533 = vsel %vm517, %v448, %v482
      %v534 = vsel %vm518, %v447, %v481
      %v535 = vsel %vm519, %v446, %v480
      %v536 = vsel %vm520, %v445, %v479
      %v537 = vsel %vm521, %v444, %v478
      %v538 = vsel %vm522, %v443, %v477
      %v539 = vsel %vm523, %v458, %v476
      %v540 = vmax.f32 %v264, %v524
      %v541 = vmax.f32 %v265, %v525
      %v542 = vmax.f32 %v266, %v526
      %v543 = vmax.f32 %v267, %v527
      %v544 = vmax.f32 %v268, %v528
      %v545 = vmax.f32 %v269, %v529
      %v546 = vmax.f32 %v270, %v530
      %v547 = vmax.f32 %v271, %v531
      %v548 = vmax.f32 %v272, %v532
      %v549 = vmax.f32 %v273, %v533
      %v550 = vmax.f32 %v274, %v534
      %v551 = vmax.f32 %v275, %v535
      %v552 = vmax.f32 %v276, %v536
      %v553 = vmax.f32 %v277, %v537
      %v554 = vmax.f32 %v278, %v538
      %v555 = vmax.f32 %v279, %v539
      %v556 = vsel %vm377, 1, 0
      %v557 = vsel %vm378, 1, 0
      %v558 = vsel %vm379, 1, 0
      %v559 = vsel %vm380, 1, 0
      %v560 = vsel %vm381, 1, 0
      %v561 = vsel %vm382, 1, 0
      %v562 = vsel %vm383, 1, 0
      %v563 = vsel %vm384, 1, 0
      %v564 = vsel %vm385, 1, 0
      %v565 = vsel %vm386, 1, 0
      %v566 = vsel %vm387, 1, 0
      %v567 = vsel %vm388, 1, 0
      %v568 = vsel %vm389, 1, 0
      %v569 = vsel %vm390, 1, 0
      %v570 = vsel %vm391, 1, 0
      %v571 = vsel %vm392, 1, 0
      %vm572 = vcmp.eq.s32.totalorder %v556, 1
      %vm573 = vcmp.eq.s32.totalorder %v557, 1
      %vm574 = vcmp.eq.s32.totalorder %v558, 1
      %vm575 = vcmp.eq.s32.totalorder %v559, 1
      %vm576 = vcmp.eq.s32.totalorder %v560, 1
      %vm577 = vcmp.eq.s32.totalorder %v561, 1
      %vm578 = vcmp.eq.s32.totalorder %v562, 1
      %vm579 = vcmp.eq.s32.totalorder %v563, 1
      %vm580 = vcmp.eq.s32.totalorder %v564, 1
      %vm581 = vcmp.eq.s32.totalorder %v565, 1
      %vm582 = vcmp.eq.s32.totalorder %v566, 1
      %vm583 = vcmp.eq.s32.totalorder %v567, 1
      %vm584 = vcmp.eq.s32.totalorder %v568, 1
      %vm585 = vcmp.eq.s32.totalorder %v569, 1
      %vm586 = vcmp.eq.s32.totalorder %v570, 1
      %vm587 = vcmp.eq.s32.totalorder %v571, 1
      %v588 = vsel %vm572, %v542, %v554
      %v589 = vsel %vm573, %v543, %v555
      %v590 = vsel %vm574, %v544, %v540
      %v591 = vsel %vm575, %v545, %v541
      %v592 = vsel %vm576, %v546, %v542
      %v593 = vsel %vm577, %v547, %v543
      %v594 = vsel %vm578, %v548, %v544
      %v595 = vsel %vm579, %v549, %v545
      %v596 = vsel %vm580, %v550, %v546
      %v597 = vsel %vm581, %v551, %v547
      %v598 = vsel %vm582, %v552, %v548
      %v599 = vsel %vm583, %v553, %v549
      %v600 = vsel %vm584, %v554, %v550
      %v601 = vsel %vm585, %v555, %v551
      %v602 = vsel %vm586, %v540, %v552
      %v603 = vsel %vm587, %v541, %v553
      %v604 = vmax.f32 %v540, %v588
      %v605 = vmax.f32 %v541, %v589
      %v606 = vmax.f32 %v542, %v590
      %v607 = vmax.f32 %v543, %v591
      %v608 = vmax.f32 %v544, %v592
      %v609 = vmax.f32 %v545, %v593
      %v610 = vmax.f32 %v546, %v594
      %v611 = vmax.f32 %v547, %v595
      %v612 = vmax.f32 %v548, %v596
      %v613 = vmax.f32 %v549, %v597
      %v614 = vmax.f32 %v550, %v598
      %v615 = vmax.f32 %v551, %v599
      %v616 = vmax.f32 %v552, %v600
      %v617 = vmax.f32 %v553, %v601
      %v618 = vmax.f32 %v554, %v602
      %v619 = vmax.f32 %v555, %v603
      %v620 = vld [vmem:[%s2] sm:$0xf]
      %vm621 = vcmask 31744
      %v623 = vsel %vm621, %v604, 0
      %v626 = vsel %vm621, %v605, 0
      %v629 = vsel %vm621, %v606, 0
      %v632 = vsel %vm621, %v607, 0
      %v635 = vsel %vm621, %v608, 0
      %v638 = vsel %vm621, %v609, 0
      %v641 = vsel %vm621, %v610, 0
      %v644 = vsel %vm621, %v611, 0
      %v647 = vsel %vm621, %v612, 0
      %v650 = vsel %vm621, %v613, 0
      %v653 = vsel %vm621, %v614, 0
      %v656 = vsel %vm621, %v615, 0
      %v659 = vsel %vm621, %v616, 0
      %v662 = vsel %vm621, %v617, 0
      %v665 = vsel %vm621, %v618, 0
      %v668 = vsel %vm621, %v619, 0
      %vm670 = vcmask 1043456
      %v672 = vsel %vm670, %v620, 0
      %674 = vmatprep.subr.mxu0 0.0
      %675 = vmatpush1.msra.mxu0 0.0
      %676 = vmatprep.subr.mxu0 0.0
      %677 = vmatpush1.msra.mxu0 0.0
      %678 = vmatprep.subr.mxu0 0.0
      %679 = vmatpush1.msra.mxu0 0.0
      %680 = vmatprep.subr.mxu0 0.0
      %681 = vmatpush1.msra.mxu0 0.0
      %682 = vmatprep.subr.mxu0 0.0
      %683 = vmatpush1.msra.mxu0 0.0
      %684 = vmatprep.subr.mxu0 0.0
      %685 = vmatpush1.msra.mxu0 0.0
      %686 = vmatprep.subr.mxu0 0.0
      %687 = vmatpush1.msra.mxu0 0.0
      %688 = vmatprep.subr.mxu0 0.0
      %689 = vmatpush1.msra.mxu0 0.0
      %690 = vmatprep.subr.mxu0 0.0
      %691 = vmatpush1.msra.mxu0 0.0
      %692 = vmatprep.subr.mxu0 0.0
      %693 = vmatpush1.msra.mxu0 0.0
      %694 = vmatprep.subr.mxu0 0.0
      %695 = vmatpush1.msra.mxu0 0.0
      %696 = vmatprep.subr.mxu0 0.0
      %697 = vmatpush1.msra.mxu0 0.0
      %698 = vmatprep.subr.mxu0 0.0
      %699 = vmatpush1.msra.mxu0 0.0
      %700 = vmatprep.subr.mxu0 0.0
      %701 = vmatpush1.msra.mxu0 0.0
      %702 = vmatprep.subr.mxu0 0.0
      %703 = vmatpush1.msra.mxu0 0.0
      %704 = vmatprep.subr.mxu0 0.0
      %705 = vmatpush1.msra.mxu0 %v672
      %706 = vmatprep.subr.mxu0 0.0
      %707 = vmatpush2.msra.mxu0 0.0
      %708 = vmatprep.subr.mxu0 0.0
      %709 = vmatpush2.msra.mxu0 0.0
      %710 = vmatprep.subr.mxu0 0.0
      %711 = vmatpush2.msra.mxu0 0.0
      %712 = vmatprep.subr.mxu0 0.0
      %713 = vmatpush2.msra.mxu0 0.0
      %714 = vmatprep.subr.mxu0 0.0
      %715 = vmatpush2.msra.mxu0 0.0
      %716 = vmatprep.subr.mxu0 0.0
      %717 = vmatpush2.msra.mxu0 0.0
      %718 = vmatprep.subr.mxu0 0.0
      %719 = vmatpush2.msra.mxu0 0.0
      %720 = vmatprep.subr.mxu0 0.0
      %721 = vmatpush2.msra.mxu0 0.0
      %722 = vmatprep.subr.mxu0 0.0
      %723 = vmatpush2.msra.mxu0 0.0
      %724 = vmatprep.subr.mxu0 0.0
      %725 = vmatpush2.msra.mxu0 0.0
      %726 = vmatprep.subr.mxu0 0.0
      %727 = vmatpush2.msra.mxu0 0.0
      %728 = vmatprep.subr.mxu0 0.0
      %729 = vmatpush2.msra.mxu0 0.0
      %730 = vmatprep.subr.mxu0 0.0
      %731 = vmatpush2.msra.mxu0 0.0
      %732 = vmatprep.subr.mxu0 0.0
      %733 = vmatpush2.msra.mxu0 0.0
      %734 = vmatprep.subr.mxu0 0.0
      %735 = vmatpush2.msra.mxu0 0.0
      %736 = vmatprep.subr.mxu0 0.0
      %737 = vmatpush2.msra.mxu0 0.0
      %738 = vmatprep.mubr.f32.mxu0 0.0
      %739 = vmatmul.mubr.f32.gmra.mxu0 %v623
      %v740 = vpop.f32.mrf.mxu0
      %v741 = vadd.f32 0.0, %v740
      %v742 = vpop.f32.mrf.mxu0
      %743 = vmatprep.mubr.f32.mxu0 0.0
      %744 = vmatmul.mubr.f32.gmra.mxu0 %v626
      %v745 = vpop.f32.mrf.mxu0
      %v746 = vadd.f32 0.0, %v745
      %v747 = vpop.f32.mrf.mxu0
      %748 = vmatprep.mubr.f32.mxu0 0.0
      %749 = vmatmul.mubr.f32.gmra.mxu0 %v629
      %v750 = vpop.f32.mrf.mxu0
      %v751 = vadd.f32 0.0, %v750
      %v752 = vpop.f32.mrf.mxu0
      %753 = vmatprep.mubr.f32.mxu0 0.0
      %754 = vmatmul.mubr.f32.gmra.mxu0 %v632
      %v755 = vpop.f32.mrf.mxu0
      %v756 = vadd.f32 0.0, %v755
      %v757 = vpop.f32.mrf.mxu0
      %758 = vmatprep.mubr.f32.mxu0 0.0
      %759 = vmatmul.mubr.f32.gmra.mxu0 %v635
      %v760 = vpop.f32.mrf.mxu0
      %v761 = vadd.f32 0.0, %v760
      %v762 = vpop.f32.mrf.mxu0
      %763 = vmatprep.mubr.f32.mxu0 0.0
      %764 = vmatmul.mubr.f32.gmra.mxu0 %v638
      %v765 = vpop.f32.mrf.mxu0
      %v766 = vadd.f32 0.0, %v765
      %v767 = vpop.f32.mrf.mxu0
      %768 = vmatprep.mubr.f32.mxu0 0.0
      %769 = vmatmul.mubr.f32.gmra.mxu0 %v641
      %v770 = vpop.f32.mrf.mxu0
      %v771 = vadd.f32 0.0, %v770
      %v772 = vpop.f32.mrf.mxu0
      %773 = vmatprep.mubr.f32.mxu0 0.0
      %774 = vmatmul.mubr.f32.gmra.mxu0 %v644
      %v775 = vpop.f32.mrf.mxu0
      %v776 = vadd.f32 0.0, %v775
      %v777 = vpop.f32.mrf.mxu0
      %778 = vmatprep.mubr.f32.mxu0 0.0
      %779 = vmatmul.mubr.f32.gmra.mxu0 %v647
      %v780 = vpop.f32.mrf.mxu0
      %v781 = vadd.f32 0.0, %v780
      %v782 = vpop.f32.mrf.mxu0
      %783 = vmatprep.mubr.f32.mxu0 0.0
      %784 = vmatmul.mubr.f32.gmra.mxu0 %v650
      %v785 = vpop.f32.mrf.mxu0
      %v786 = vadd.f32 0.0, %v785
      %v787 = vpop.f32.mrf.mxu0
      %788 = vmatprep.mubr.f32.mxu0 0.0
      %789 = vmatmul.mubr.f32.gmra.mxu0 %v653
      %v790 = vpop.f32.mrf.mxu0
      %v791 = vadd.f32 0.0, %v790
      %v792 = vpop.f32.mrf.mxu0
      %793 = vmatprep.mubr.f32.mxu0 0.0
      %794 = vmatmul.mubr.f32.gmra.mxu0 %v656
      %v795 = vpop.f32.mrf.mxu0
      %v796 = vadd.f32 0.0, %v795
      %v797 = vpop.f32.mrf.mxu0
      %798 = vmatprep.mubr.f32.mxu0 0.0
      %799 = vmatmul.mubr.f32.gmra.mxu0 %v659
      %v800 = vpop.f32.mrf.mxu0
      %v801 = vadd.f32 0.0, %v800
      %v802 = vpop.f32.mrf.mxu0
      %803 = vmatprep.mubr.f32.mxu0 0.0
      %804 = vmatmul.mubr.f32.gmra.mxu0 %v662
      %v805 = vpop.f32.mrf.mxu0
      %v806 = vadd.f32 0.0, %v805
      %v807 = vpop.f32.mrf.mxu0
      %808 = vmatprep.mubr.f32.mxu0 0.0
      %809 = vmatmul.mubr.f32.gmra.mxu0 %v665
      %v810 = vpop.f32.mrf.mxu0
      %v811 = vadd.f32 0.0, %v810
      %v812 = vpop.f32.mrf.mxu0
      %813 = vmatprep.mubr.f32.mxu0 0.0
      %814 = vmatmul.mubr.f32.gmra.mxu0 %v668
      %v815 = vpop.f32.mrf.mxu0
      %v816 = vadd.f32 0.0, %v815
      %v817 = vpop.f32.mrf.mxu0
      %818 = vdwg.mxu0
      %v820 = vsel %vm621, %v264, 0
      %v823 = vsel %vm621, %v265, 0
      %v826 = vsel %vm621, %v266, 0
      %v829 = vsel %vm621, %v267, 0
      %v832 = vsel %vm621, %v268, 0
      %v835 = vsel %vm621, %v269, 0
      %v838 = vsel %vm621, %v270, 0
      %v841 = vsel %vm621, %v271, 0
      %v844 = vsel %vm621, %v272, 0
      %v847 = vsel %vm621, %v273, 0
      %v850 = vsel %vm621, %v274, 0
      %v853 = vsel %vm621, %v275, 0
      %v856 = vsel %vm621, %v276, 0
      %v859 = vsel %vm621, %v277, 0
      %v862 = vsel %vm621, %v278, 0
      %v865 = vsel %vm621, %v279, 0
      %v868 = vsel %vm670, %v425, 0
      %870 = vmatprep.subr.mxu0 0.0
      %871 = vmatpush1.msra.mxu0 0.0
      %872 = vmatprep.subr.mxu0 0.0
      %873 = vmatpush1.msra.mxu0 0.0
      %874 = vmatprep.subr.mxu0 0.0
      %875 = vmatpush1.msra.mxu0 0.0
      %876 = vmatprep.subr.mxu0 0.0
      %877 = vmatpush1.msra.mxu0 0.0
      %878 = vmatprep.subr.mxu0 0.0
      %879 = vmatpush1.msra.mxu0 0.0
      %880 = vmatprep.subr.mxu0 0.0
      %881 = vmatpush1.msra.mxu0 0.0
      %882 = vmatprep.subr.mxu0 0.0
      %883 = vmatpush1.msra.mxu0 0.0
      %884 = vmatprep.subr.mxu0 0.0
      %885 = vmatpush1.msra.mxu0 0.0
      %886 = vmatprep.subr.mxu0 0.0
      %887 = vmatpush1.msra.mxu0 0.0
      %888 = vmatprep.subr.mxu0 0.0
      %889 = vmatpush1.msra.mxu0 0.0
      %890 = vmatprep.subr.mxu0 0.0
      %891 = vmatpush1.msra.mxu0 0.0
      %892 = vmatprep.subr.mxu0 0.0
      %893 = vmatpush1.msra.mxu0 0.0
      %894 = vmatprep.subr.mxu0 0.0
      %895 = vmatpush1.msra.mxu0 0.0
      %896 = vmatprep.subr.mxu0 0.0
      %897 = vmatpush1.msra.mxu0 0.0
      %898 = vmatprep.subr.mxu0 0.0
      %899 = vmatpush1.msra.mxu0 0.0
      %900 = vmatprep.subr.mxu0 0.0
      %901 = vmatpush1.msra.mxu0 %v868
      %902 = vmatprep.subr.mxu0 0.0
      %903 = vmatpush2.msra.mxu0 0.0
      %904 = vmatprep.subr.mxu0 0.0
      %905 = vmatpush2.msra.mxu0 0.0
      %906 = vmatprep.subr.mxu0 0.0
      %907 = vmatpush2.msra.mxu0 0.0
      %908 = vmatprep.subr.mxu0 0.0
      %909 = vmatpush2.msra.mxu0 0.0
      %910 = vmatprep.subr.mxu0 0.0
      %911 = vmatpush2.msra.mxu0 0.0
      %912 = vmatprep.subr.mxu0 0.0
      %913 = vmatpush2.msra.mxu0 0.0
      %914 = vmatprep.subr.mxu0 0.0
      %915 = vmatpush2.msra.mxu0 0.0
      %916 = vmatprep.subr.mxu0 0.0
      %917 = vmatpush2.msra.mxu0 0.0
      %918 = vmatprep.subr.mxu0 0.0
      %919 = vmatpush2.msra.mxu0 0.0
      %920 = vmatprep.subr.mxu0 0.0
      %921 = vmatpush2.msra.mxu0 0.0
      %922 = vmatprep.subr.mxu0 0.0
      %923 = vmatpush2.msra.mxu0 0.0
      %924 = vmatprep.subr.mxu0 0.0
      %925 = vmatpush2.msra.mxu0 0.0
      %926 = vmatprep.subr.mxu0 0.0
      %927 = vmatpush2.msra.mxu0 0.0
      %928 = vmatprep.subr.mxu0 0.0
      %929 = vmatpush2.msra.mxu0 0.0
      %930 = vmatprep.subr.mxu0 0.0
      %931 = vmatpush2.msra.mxu0 0.0
      %932 = vmatprep.subr.mxu0 0.0
      %933 = vmatpush2.msra.mxu0 0.0
      %934 = vmatprep.mubr.f32.mxu0 0.0
      %935 = vmatmul.mubr.f32.gmra.mxu0 %v820
      %v936 = vpop.f32.mrf.mxu0
      %v937 = vadd.f32 %v741, %v936
      %v938 = vpop.f32.mrf.mxu0
      %939 = vmatprep.mubr.f32.mxu0 0.0
      %940 = vmatmul.mubr.f32.gmra.mxu0 %v823
      %v941 = vpop.f32.mrf.mxu0
      %v942 = vadd.f32 %v746, %v941
      %v943 = vpop.f32.mrf.mxu0
      %944 = vmatprep.mubr.f32.mxu0 0.0
      %945 = vmatmul.mubr.f32.gmra.mxu0 %v826
      %v946 = vpop.f32.mrf.mxu0
      %v947 = vadd.f32 %v751, %v946
      %v948 = vpop.f32.mrf.mxu0
      %949 = vmatprep.mubr.f32.mxu0 0.0
      %950 = vmatmul.mubr.f32.gmra.mxu0 %v829
      %v951 = vpop.f32.mrf.mxu0
      %v952 = vadd.f32 %v756, %v951
      %v953 = vpop.f32.mrf.mxu0
      %954 = vmatprep.mubr.f32.mxu0 0.0
      %955 = vmatmul.mubr.f32.gmra.mxu0 %v832
      %v956 = vpop.f32.mrf.mxu0
      %v957 = vadd.f32 %v761, %v956
      %v958 = vpop.f32.mrf.mxu0
      %959 = vmatprep.mubr.f32.mxu0 0.0
      %960 = vmatmul.mubr.f32.gmra.mxu0 %v835
      %v961 = vpop.f32.mrf.mxu0
      %v962 = vadd.f32 %v766, %v961
      %v963 = vpop.f32.mrf.mxu0
      %964 = vmatprep.mubr.f32.mxu0 0.0
      %965 = vmatmul.mubr.f32.gmra.mxu0 %v838
      %v966 = vpop.f32.mrf.mxu0
      %v967 = vadd.f32 %v771, %v966
      %v968 = vpop.f32.mrf.mxu0
      %969 = vmatprep.mubr.f32.mxu0 0.0
      %970 = vmatmul.mubr.f32.gmra.mxu0 %v841
      %v971 = vpop.f32.mrf.mxu0
      %v972 = vadd.f32 %v776, %v971
      %v973 = vpop.f32.mrf.mxu0
      %974 = vmatprep.mubr.f32.mxu0 0.0
      %975 = vmatmul.mubr.f32.gmra.mxu0 %v844
      %v976 = vpop.f32.mrf.mxu0
      %v977 = vadd.f32 %v781, %v976
      %v978 = vpop.f32.mrf.mxu0
      %979 = vmatprep.mubr.f32.mxu0 0.0
      %980 = vmatmul.mubr.f32.gmra.mxu0 %v847
      %v981 = vpop.f32.mrf.mxu0
      %v982 = vadd.f32 %v786, %v981
      %v983 = vpop.f32.mrf.mxu0
      %984 = vmatprep.mubr.f32.mxu0 0.0
      %985 = vmatmul.mubr.f32.gmra.mxu0 %v850
      %v986 = vpop.f32.mrf.mxu0
      %v987 = vadd.f32 %v791, %v986
      %v988 = vpop.f32.mrf.mxu0
      %989 = vmatprep.mubr.f32.mxu0 0.0
      %990 = vmatmul.mubr.f32.gmra.mxu0 %v853
      %v991 = vpop.f32.mrf.mxu0
      %v992 = vadd.f32 %v796, %v991
      %v993 = vpop.f32.mrf.mxu0
      %994 = vmatprep.mubr.f32.mxu0 0.0
      %995 = vmatmul.mubr.f32.gmra.mxu0 %v856
      %v996 = vpop.f32.mrf.mxu0
      %v997 = vadd.f32 %v801, %v996
      %v998 = vpop.f32.mrf.mxu0
      %999 = vmatprep.mubr.f32.mxu0 0.0
      %1000 = vmatmul.mubr.f32.gmra.mxu0 %v859
      %v1001 = vpop.f32.mrf.mxu0
      %v1002 = vadd.f32 %v806, %v1001
      %v1003 = vpop.f32.mrf.mxu0
      %1004 = vmatprep.mubr.f32.mxu0 0.0
      %1005 = vmatmul.mubr.f32.gmra.mxu0 %v862
      %v1006 = vpop.f32.mrf.mxu0
      %v1007 = vadd.f32 %v811, %v1006
      %v1008 = vpop.f32.mrf.mxu0
      %1009 = vmatprep.mubr.f32.mxu0 0.0
      %1010 = vmatmul.mubr.f32.gmra.mxu0 %v865
      %v1011 = vpop.f32.mrf.mxu0
      %v1012 = vadd.f32 %v816, %v1011
      %v1013 = vpop.f32.mrf.mxu0
      %1014 = vdwg.mxu0
      %v1015 = vrot.slane %v604, 2
      %v1016 = vrot.slane %v605, 2
      %v1017 = vrot.slane %v606, 2
      %v1018 = vrot.slane %v607, 2
      %v1019 = vrot.slane %v608, 2
      %v1020 = vrot.slane %v609, 2
      %v1021 = vrot.slane %v610, 2
      %v1022 = vrot.slane %v611, 2
      %v1023 = vrot.slane %v612, 2
      %v1024 = vrot.slane %v613, 2
      %v1025 = vrot.slane %v614, 2
      %v1026 = vrot.slane %v615, 2
      %v1027 = vrot.slane %v616, 2
      %v1028 = vrot.slane %v617, 2
      %v1029 = vrot.slane %v618, 2
      %v1030 = vrot.slane %v619, 2
      %vm1031 = vcmp.lt.s32.totalorder %v281, 6
      %v1032 = vsel %vm1031, %v1029, %v1030
      %v1033 = vsel %vm1031, %v1028, %v1029
      %v1034 = vsel %vm1031, %v1027, %v1028
      %v1035 = vsel %vm1031, %v1026, %v1027
      %v1036 = vsel %vm1031, %v1025, %v1026
      %v1037 = vsel %vm1031, %v1024, %v1025
      %v1038 = vsel %vm1031, %v1023, %v1024
      %v1039 = vsel %vm1031, %v1022, %v1023
      %v1040 = vsel %vm1031, %v1021, %v1022
      %v1041 = vsel %vm1031, %v1020, %v1021
      %v1042 = vsel %vm1031, %v1019, %v1020
      %v1043 = vsel %vm1031, %v1018, %v1019
      %v1044 = vsel %vm1031, %v1017, %v1018
      %v1045 = vsel %vm1031, %v1016, %v1017
      %v1046 = vsel %vm1031, %v1015, %v1016
      %v1047 = vsel %vm1031, %v1030, %v1015
      %v1048 = vrot.slane %v604, 6
      %v1049 = vrot.slane %v605, 6
      %v1050 = vrot.slane %v606, 6
      %v1051 = vrot.slane %v607, 6
      %v1052 = vrot.slane %v608, 6
      %v1053 = vrot.slane %v609, 6
      %v1054 = vrot.slane %v610, 6
      %v1055 = vrot.slane %v611, 6
      %v1056 = vrot.slane %v612, 6
      %v1057 = vrot.slane %v613, 6
      %v1058 = vrot.slane %v614, 6
      %v1059 = vrot.slane %v615, 6
      %v1060 = vrot.slane %v616, 6
      %v1061 = vrot.slane %v617, 6
      %v1062 = vrot.slane %v618, 6
      %v1063 = vrot.slane %v619, 6
      %vm1064 = vcmp.lt.s32.totalorder %v281, 2
      %v1065 = vsel %vm1064, %v1062, %v1063
      %v1066 = vsel %vm1064, %v1061, %v1062
      %v1067 = vsel %vm1064, %v1060, %v1061
      %v1068 = vsel %vm1064, %v1059, %v1060
      %v1069 = vsel %vm1064, %v1058, %v1059
      %v1070 = vsel %vm1064, %v1057, %v1058
      %v1071 = vsel %vm1064, %v1056, %v1057
      %v1072 = vsel %vm1064, %v1055, %v1056
      %v1073 = vsel %vm1064, %v1054, %v1055
      %v1074 = vsel %vm1064, %v1053, %v1054
      %v1075 = vsel %vm1064, %v1052, %v1053
      %v1076 = vsel %vm1064, %v1051, %v1052
      %v1077 = vsel %vm1064, %v1050, %v1051
      %v1078 = vsel %vm1064, %v1049, %v1050
      %v1079 = vsel %vm1064, %v1048, %v1049
      %v1080 = vsel %vm1064, %v1063, %v1048
      %v1081 = vsel %vm345, 1, 0
      %v1082 = vsel %vm346, 1, 0
      %v1083 = vsel %vm347, 1, 0
      %v1084 = vsel %vm348, 1, 0
      %v1085 = vsel %vm349, 1, 0
      %v1086 = vsel %vm350, 1, 0
      %v1087 = vsel %vm351, 1, 0
      %v1088 = vsel %vm352, 1, 0
      %v1089 = vsel %vm353, 1, 0
      %v1090 = vsel %vm354, 1, 0
      %v1091 = vsel %vm355, 1, 0
      %v1092 = vsel %vm356, 1, 0
      %v1093 = vsel %vm357, 1, 0
      %v1094 = vsel %vm358, 1, 0
      %v1095 = vsel %vm359, 1, 0
      %v1096 = vsel %vm360, 1, 0
      %vm1097 = vcmp.eq.s32.totalorder %v1081, 1
      %vm1098 = vcmp.eq.s32.totalorder %v1082, 1
      %vm1099 = vcmp.eq.s32.totalorder %v1083, 1
      %vm1100 = vcmp.eq.s32.totalorder %v1084, 1
      %vm1101 = vcmp.eq.s32.totalorder %v1085, 1
      %vm1102 = vcmp.eq.s32.totalorder %v1086, 1
      %vm1103 = vcmp.eq.s32.totalorder %v1087, 1
      %vm1104 = vcmp.eq.s32.totalorder %v1088, 1
      %vm1105 = vcmp.eq.s32.totalorder %v1089, 1
      %vm1106 = vcmp.eq.s32.totalorder %v1090, 1
      %vm1107 = vcmp.eq.s32.totalorder %v1091, 1
      %vm1108 = vcmp.eq.s32.totalorder %v1092, 1
      %vm1109 = vcmp.eq.s32.totalorder %v1093, 1
      %vm1110 = vcmp.eq.s32.totalorder %v1094, 1
      %vm1111 = vcmp.eq.s32.totalorder %v1095, 1
      %vm1112 = vcmp.eq.s32.totalorder %v1096, 1
      %v1113 = vsel %vm1097, %v1046, %v1080
      %v1114 = vsel %vm1098, %v1045, %v1079
      %v1115 = vsel %vm1099, %v1044, %v1078
      %v1116 = vsel %vm1100, %v1043, %v1077
      %v1117 = vsel %vm1101, %v1042, %v1076
      %v1118 = vsel %vm1102, %v1041, %v1075
      %v1119 = vsel %vm1103, %v1040, %v1074
      %v1120 = vsel %vm1104, %v1039, %v1073
      %v1121 = vsel %vm1105, %v1038, %v1072
      %v1122 = vsel %vm1106, %v1037, %v1071
      %v1123 = vsel %vm1107, %v1036, %v1070
      %v1124 = vsel %vm1108, %v1035, %v1069
      %v1125 = vsel %vm1109, %v1034, %v1068
      %v1126 = vsel %vm1110, %v1033, %v1067
      %v1127 = vsel %vm1111, %v1032, %v1066
      %v1128 = vsel %vm1112, %v1047, %v1065
      %v1129 = vmax.f32 %v604, %v1113
      %v1130 = vmax.f32 %v605, %v1114
      %v1131 = vmax.f32 %v606, %v1115
      %v1132 = vmax.f32 %v607, %v1116
      %v1133 = vmax.f32 %v608, %v1117
      %v1134 = vmax.f32 %v609, %v1118
      %v1135 = vmax.f32 %v610, %v1119
      %v1136 = vmax.f32 %v611, %v1120
      %v1137 = vmax.f32 %v612, %v1121
      %v1138 = vmax.f32 %v613, %v1122
      %v1139 = vmax.f32 %v614, %v1123
      %v1140 = vmax.f32 %v615, %v1124
      %v1141 = vmax.f32 %v616, %v1125
      %v1142 = vmax.f32 %v617, %v1126
      %v1143 = vmax.f32 %v618, %v1127
      %v1144 = vmax.f32 %v619, %v1128
      %v1145 = vsel %vm409, 1, 0
      %v1146 = vsel %vm410, 1, 0
      %v1147 = vsel %vm411, 1, 0
      %v1148 = vsel %vm412, 1, 0
      %v1149 = vsel %vm413, 1, 0
      %v1150 = vsel %vm414, 1, 0
      %v1151 = vsel %vm415, 1, 0
      %v1152 = vsel %vm416, 1, 0
      %v1153 = vsel %vm417, 1, 0
      %v1154 = vsel %vm418, 1, 0
      %v1155 = vsel %vm419, 1, 0
      %v1156 = vsel %vm420, 1, 0
      %v1157 = vsel %vm421, 1, 0
      %v1158 = vsel %vm422, 1, 0
      %v1159 = vsel %vm423, 1, 0
      %v1160 = vsel %vm424, 1, 0
      %vm1161 = vcmp.eq.s32.totalorder %v1145, 1
      %vm1162 = vcmp.eq.s32.totalorder %v1146, 1
      %vm1163 = vcmp.eq.s32.totalorder %v1147, 1
      %vm1164 = vcmp.eq.s32.totalorder %v1148, 1
      %vm1165 = vcmp.eq.s32.totalorder %v1149, 1
      %vm1166 = vcmp.eq.s32.totalorder %v1150, 1
      %vm1167 = vcmp.eq.s32.totalorder %v1151, 1
      %vm1168 = vcmp.eq.s32.totalorder %v1152, 1
      %vm1169 = vcmp.eq.s32.totalorder %v1153, 1
      %vm1170 = vcmp.eq.s32.totalorder %v1154, 1
      %vm1171 = vcmp.eq.s32.totalorder %v1155, 1
      %vm1172 = vcmp.eq.s32.totalorder %v1156, 1
      %vm1173 = vcmp.eq.s32.totalorder %v1157, 1
      %vm1174 = vcmp.eq.s32.totalorder %v1158, 1
      %vm1175 = vcmp.eq.s32.totalorder %v1159, 1
      %vm1176 = vcmp.eq.s32.totalorder %v1160, 1
      %v1177 = vsel %vm1161, %v1133, %v1141
      %v1178 = vsel %vm1162, %v1134, %v1142
      %v1179 = vsel %vm1163, %v1135, %v1143
      %v1180 = vsel %vm1164, %v1136, %v1144
      %v1181 = vsel %vm1165, %v1137, %v1129
      %v1182 = vsel %vm1166, %v1138, %v1130
      %v1183 = vsel %vm1167, %v1139, %v1131
      %v1184 = vsel %vm1168, %v1140, %v1132
      %v1185 = vsel %vm1169, %v1141, %v1133
      %v1186 = vsel %vm1170, %v1142, %v1134
      %v1187 = vsel %vm1171, %v1143, %v1135
      %v1188 = vsel %vm1172, %v1144, %v1136
      %v1189 = vsel %vm1173, %v1129, %v1137
      %v1190 = vsel %vm1174, %v1130, %v1138
      %v1191 = vsel %vm1175, %v1131, %v1139
      %v1192 = vsel %vm1176, %v1132, %v1140
      %v1193 = vmax.f32 %v1129, %v1177
      %v1194 = vmax.f32 %v1130, %v1178
      %v1195 = vmax.f32 %v1131, %v1179
      %v1196 = vmax.f32 %v1132, %v1180
      %v1197 = vmax.f32 %v1133, %v1181
      %v1198 = vmax.f32 %v1134, %v1182
      %v1199 = vmax.f32 %v1135, %v1183
      %v1200 = vmax.f32 %v1136, %v1184
      %v1201 = vmax.f32 %v1137, %v1185
      %v1202 = vmax.f32 %v1138, %v1186
      %v1203 = vmax.f32 %v1139, %v1187
      %v1204 = vmax.f32 %v1140, %v1188
      %v1205 = vmax.f32 %v1141, %v1189
      %v1206 = vmax.f32 %v1142, %v1190
      %v1207 = vmax.f32 %v1143, %v1191
      %v1208 = vmax.f32 %v1144, %v1192
      %v1209 = vld [vmem:[%s3] sm:$0xf]
      %v1211 = vsel %vm621, %v1193, 0
      %v1214 = vsel %vm621, %v1194, 0
      %v1217 = vsel %vm621, %v1195, 0
      %v1220 = vsel %vm621, %v1196, 0
      %v1223 = vsel %vm621, %v1197, 0
      %v1226 = vsel %vm621, %v1198, 0
      %v1229 = vsel %vm621, %v1199, 0
      %v1232 = vsel %vm621, %v1200, 0
      %v1235 = vsel %vm621, %v1201, 0
      %v1238 = vsel %vm621, %v1202, 0
      %v1241 = vsel %vm621, %v1203, 0
      %v1244 = vsel %vm621, %v1204, 0
      %v1247 = vsel %vm621, %v1205, 0
      %v1250 = vsel %vm621, %v1206, 0
      %v1253 = vsel %vm621, %v1207, 0
      %v1256 = vsel %vm621, %v1208, 0
      %v1259 = vsel %vm670, %v1209, 0
      %1261 = vmatprep.subr.mxu0 0.0
      %1262 = vmatpush1.msra.mxu0 0.0
      %1263 = vmatprep.subr.mxu0 0.0
      %1264 = vmatpush1.msra.mxu0 0.0
      %1265 = vmatprep.subr.mxu0 0.0
      %1266 = vmatpush1.msra.mxu0 0.0
      %1267 = vmatprep.subr.mxu0 0.0
      %1268 = vmatpush1.msra.mxu0 0.0
      %1269 = vmatprep.subr.mxu0 0.0
      %1270 = vmatpush1.msra.mxu0 0.0
      %1271 = vmatprep.subr.mxu0 0.0
      %1272 = vmatpush1.msra.mxu0 0.0
      %1273 = vmatprep.subr.mxu0 0.0
      %1274 = vmatpush1.msra.mxu0 0.0
      %1275 = vmatprep.subr.mxu0 0.0
      %1276 = vmatpush1.msra.mxu0 0.0
      %1277 = vmatprep.subr.mxu0 0.0
      %1278 = vmatpush1.msra.mxu0 0.0
      %1279 = vmatprep.subr.mxu0 0.0
      %1280 = vmatpush1.msra.mxu0 0.0
      %1281 = vmatprep.subr.mxu0 0.0
      %1282 = vmatpush1.msra.mxu0 0.0
      %1283 = vmatprep.subr.mxu0 0.0
      %1284 = vmatpush1.msra.mxu0 0.0
      %1285 = vmatprep.subr.mxu0 0.0
      %1286 = vmatpush1.msra.mxu0 0.0
      %1287 = vmatprep.subr.mxu0 0.0
      %1288 = vmatpush1.msra.mxu0 0.0
      %1289 = vmatprep.subr.mxu0 0.0
      %1290 = vmatpush1.msra.mxu0 0.0
      %1291 = vmatprep.subr.mxu0 0.0
      %1292 = vmatpush1.msra.mxu0 %v1259
      %1293 = vmatprep.subr.mxu0 0.0
      %1294 = vmatpush2.msra.mxu0 0.0
      %1295 = vmatprep.subr.mxu0 0.0
      %1296 = vmatpush2.msra.mxu0 0.0
      %1297 = vmatprep.subr.mxu0 0.0
      %1298 = vmatpush2.msra.mxu0 0.0
      %1299 = vmatprep.subr.mxu0 0.0
      %1300 = vmatpush2.msra.mxu0 0.0
      %1301 = vmatprep.subr.mxu0 0.0
      %1302 = vmatpush2.msra.mxu0 0.0
      %1303 = vmatprep.subr.mxu0 0.0
      %1304 = vmatpush2.msra.mxu0 0.0
      %1305 = vmatprep.subr.mxu0 0.0
      %1306 = vmatpush2.msra.mxu0 0.0
      %1307 = vmatprep.subr.mxu0 0.0
      %1308 = vmatpush2.msra.mxu0 0.0
      %1309 = vmatprep.subr.mxu0 0.0
      %1310 = vmatpush2.msra.mxu0 0.0
      %1311 = vmatprep.subr.mxu0 0.0
      %1312 = vmatpush2.msra.mxu0 0.0
      %1313 = vmatprep.subr.mxu0 0.0
      %1314 = vmatpush2.msra.mxu0 0.0
      %1315 = vmatprep.subr.mxu0 0.0
      %1316 = vmatpush2.msra.mxu0 0.0
      %1317 = vmatprep.subr.mxu0 0.0
      %1318 = vmatpush2.msra.mxu0 0.0
      %1319 = vmatprep.subr.mxu0 0.0
      %1320 = vmatpush2.msra.mxu0 0.0
      %1321 = vmatprep.subr.mxu0 0.0
      %1322 = vmatpush2.msra.mxu0 0.0
      %1323 = vmatprep.subr.mxu0 0.0
      %1324 = vmatpush2.msra.mxu0 0.0
      %1325 = vmatprep.mubr.f32.mxu0 0.0
      %1326 = vmatmul.mubr.f32.gmra.mxu0 %v1211
      %v1327 = vpop.f32.mrf.mxu0
      %v1328 = vadd.f32 0.0, %v1327
      %v1329 = vpop.f32.mrf.mxu0
      %1330 = vmatprep.mubr.f32.mxu0 0.0
      %1331 = vmatmul.mubr.f32.gmra.mxu0 %v1214
      %v1332 = vpop.f32.mrf.mxu0
      %v1333 = vadd.f32 0.0, %v1332
      %v1334 = vpop.f32.mrf.mxu0
      %1335 = vmatprep.mubr.f32.mxu0 0.0
      %1336 = vmatmul.mubr.f32.gmra.mxu0 %v1217
      %v1337 = vpop.f32.mrf.mxu0
      %v1338 = vadd.f32 0.0, %v1337
      %v1339 = vpop.f32.mrf.mxu0
      %1340 = vmatprep.mubr.f32.mxu0 0.0
      %1341 = vmatmul.mubr.f32.gmra.mxu0 %v1220
      %v1342 = vpop.f32.mrf.mxu0
      %v1343 = vadd.f32 0.0, %v1342
      %v1344 = vpop.f32.mrf.mxu0
      %1345 = vmatprep.mubr.f32.mxu0 0.0
      %1346 = vmatmul.mubr.f32.gmra.mxu0 %v1223
      %v1347 = vpop.f32.mrf.mxu0
      %v1348 = vadd.f32 0.0, %v1347
      %v1349 = vpop.f32.mrf.mxu0
      %1350 = vmatprep.mubr.f32.mxu0 0.0
      %1351 = vmatmul.mubr.f32.gmra.mxu0 %v1226
      %v1352 = vpop.f32.mrf.mxu0
      %v1353 = vadd.f32 0.0, %v1352
      %v1354 = vpop.f32.mrf.mxu0
      %1355 = vmatprep.mubr.f32.mxu0 0.0
      %1356 = vmatmul.mubr.f32.gmra.mxu0 %v1229
      %v1357 = vpop.f32.mrf.mxu0
      %v1358 = vadd.f32 0.0, %v1357
      %v1359 = vpop.f32.mrf.mxu0
      %1360 = vmatprep.mubr.f32.mxu0 0.0
      %1361 = vmatmul.mubr.f32.gmra.mxu0 %v1232
      %v1362 = vpop.f32.mrf.mxu0
      %v1363 = vadd.f32 0.0, %v1362
      %v1364 = vpop.f32.mrf.mxu0
      %1365 = vmatprep.mubr.f32.mxu0 0.0
      %1366 = vmatmul.mubr.f32.gmra.mxu0 %v1235
      %v1367 = vpop.f32.mrf.mxu0
      %v1368 = vadd.f32 0.0, %v1367
      %v1369 = vpop.f32.mrf.mxu0
      %1370 = vmatprep.mubr.f32.mxu0 0.0
      %1371 = vmatmul.mubr.f32.gmra.mxu0 %v1238
      %v1372 = vpop.f32.mrf.mxu0
      %v1373 = vadd.f32 0.0, %v1372
      %v1374 = vpop.f32.mrf.mxu0
      %1375 = vmatprep.mubr.f32.mxu0 0.0
      %1376 = vmatmul.mubr.f32.gmra.mxu0 %v1241
      %v1377 = vpop.f32.mrf.mxu0
      %v1378 = vadd.f32 0.0, %v1377
      %v1379 = vpop.f32.mrf.mxu0
      %1380 = vmatprep.mubr.f32.mxu0 0.0
      %1381 = vmatmul.mubr.f32.gmra.mxu0 %v1244
      %v1382 = vpop.f32.mrf.mxu0
      %v1383 = vadd.f32 0.0, %v1382
      %v1384 = vpop.f32.mrf.mxu0
      %1385 = vmatprep.mubr.f32.mxu0 0.0
      %1386 = vmatmul.mubr.f32.gmra.mxu0 %v1247
      %v1387 = vpop.f32.mrf.mxu0
      %v1388 = vadd.f32 0.0, %v1387
      %v1389 = vpop.f32.mrf.mxu0
      %1390 = vmatprep.mubr.f32.mxu0 0.0
      %1391 = vmatmul.mubr.f32.gmra.mxu0 %v1250
      %v1392 = vpop.f32.mrf.mxu0
      %v1393 = vadd.f32 0.0, %v1392
      %v1394 = vpop.f32.mrf.mxu0
      %1395 = vmatprep.mubr.f32.mxu0 0.0
      %1396 = vmatmul.mubr.f32.gmra.mxu0 %v1253
      %v1397 = vpop.f32.mrf.mxu0
      %v1398 = vadd.f32 0.0, %v1397
      %v1399 = vpop.f32.mrf.mxu0
      %1400 = vmatprep.mubr.f32.mxu0 0.0
      %1401 = vmatmul.mubr.f32.gmra.mxu0 %v1256
      %v1402 = vpop.f32.mrf.mxu0
      %v1403 = vadd.f32 0.0, %v1402
      %v1404 = vpop.f32.mrf.mxu0
      %1405 = vdwg.mxu0
      %v1406 = vadd.f32 %v937, %v1328
      %v1407 = vadd.f32 %v942, %v1333
      %v1408 = vadd.f32 %v947, %v1338
      %v1409 = vadd.f32 %v952, %v1343
      %v1410 = vadd.f32 %v957, %v1348
      %v1411 = vadd.f32 %v962, %v1353
      %v1412 = vadd.f32 %v967, %v1358
      %v1413 = vadd.f32 %v972, %v1363
      %v1414 = vadd.f32 %v977, %v1368
      %v1415 = vadd.f32 %v982, %v1373
      %v1416 = vadd.f32 %v987, %v1378
      %v1417 = vadd.f32 %v992, %v1383
      %v1418 = vadd.f32 %v997, %v1388
      %v1419 = vadd.f32 %v1002, %v1393
      %v1420 = vadd.f32 %v1007, %v1398
      %v1421 = vadd.f32 %v1012, %v1403
      %v1422 = vld [vmem:[%s4] sm:$0x1]
      %v1424 = vlaneseq
      %v1425 = vshrl.u32 %v1424, 7
      %v1426 = vsub.s32 0, %v1425
      %v1427 = vrot.slane %v1422, %v1426
      %v1429 = vadd.f32 %v1406, %v1427
      %v1430 = vadd.f32 %v1407, %v1427
      %v1431 = vadd.f32 %v1408, %v1427
      %v1432 = vadd.f32 %v1409, %v1427
      %v1433 = vadd.f32 %v1410, %v1427
      %v1434 = vadd.f32 %v1411, %v1427
      %v1435 = vadd.f32 %v1412, %v1427
      %v1436 = vadd.f32 %v1413, %v1427
      %v1437 = vadd.f32 %v1414, %v1427
      %v1438 = vadd.f32 %v1415, %v1427
      %v1439 = vadd.f32 %v1416, %v1427
      %v1440 = vadd.f32 %v1417, %v1427
      %v1441 = vadd.f32 %v1418, %v1427
      %v1442 = vadd.f32 %v1419, %v1427
      %v1443 = vadd.f32 %v1420, %v1427
      %v1444 = vadd.f32 %v1421, %v1427
      %v1445 = vmax.f32 %v1429, 0.0
      %v1446 = vmax.f32 %v1430, 0.0
      %v1447 = vmax.f32 %v1431, 0.0
      %v1448 = vmax.f32 %v1432, 0.0
      %v1449 = vmax.f32 %v1433, 0.0
      %v1450 = vmax.f32 %v1434, 0.0
      %v1451 = vmax.f32 %v1435, 0.0
      %v1452 = vmax.f32 %v1436, 0.0
      %v1453 = vmax.f32 %v1437, 0.0
      %v1454 = vmax.f32 %v1438, 0.0
      %v1455 = vmax.f32 %v1439, 0.0
      %v1456 = vmax.f32 %v1440, 0.0
      %v1457 = vmax.f32 %v1441, 0.0
      %v1458 = vmax.f32 %v1442, 0.0
      %v1459 = vmax.f32 %v1443, 0.0
      %v1460 = vmax.f32 %v1444, 0.0
      %1461 = vst.msk [vmem:[%s262] sm:$0xff] %vm621, %v1445
      %1462 = vst.msk [vmem:[%s262 + $0x8] sm:$0xff] %vm621, %v1446
      %1463 = vst.msk [vmem:[%s262 + $0x10] sm:$0xff] %vm621, %v1447
      %1464 = vst.msk [vmem:[%s262 + $0x18] sm:$0xff] %vm621, %v1448
      %1465 = vst.msk [vmem:[%s262 + $0x20] sm:$0xff] %vm621, %v1449
      %1466 = vst.msk [vmem:[%s262 + $0x28] sm:$0xff] %vm621, %v1450
      %1467 = vst.msk [vmem:[%s262 + $0x30] sm:$0xff] %vm621, %v1451
      %1468 = vst.msk [vmem:[%s262 + $0x38] sm:$0xff] %vm621, %v1452
      %1469 = vst.msk [vmem:[%s262 + $0x40] sm:$0xff] %vm621, %v1453
      %1470 = vst.msk [vmem:[%s262 + $0x48] sm:$0xff] %vm621, %v1454
      %1471 = vst.msk [vmem:[%s262 + $0x50] sm:$0xff] %vm621, %v1455
      %1472 = vst.msk [vmem:[%s262 + $0x58] sm:$0xff] %vm621, %v1456
      %1473 = vst.msk [vmem:[%s262 + $0x60] sm:$0xff] %vm621, %v1457
      %1474 = vst.msk [vmem:[%s262 + $0x68] sm:$0xff] %vm621, %v1458
      %1475 = vst.msk [vmem:[%s262 + $0x70] sm:$0xff] %vm621, %v1459
      %1476 = vst.msk [vmem:[%s262 + $0x78] sm:$0xff] %vm621, %v1460
      %s1477 = smul.u32 16, %s21
      %p1478 = scmp.lt.s32.totalorder %s20, 1
      %s1479 = scalar_select %p1478, %s20, 1
      %p1480 = scmp.lt.s32.totalorder %s1477, 31
      %s1481 = scalar_select %p1480, %s1477, 31
      %s1482 = smul.addr %s1479, 32
      %s1483 = sadd.s32 %s1481, %s1482
      %s1484 = smul.addr %s1483, 8
      %s1485 = scalar_lea.vmem %s5, %s1484
      // Predicated region
      $region41: #{tpu_custom_call.1} parent=39 // pred_check
        %p1486 = pneg %p160
      $region42: #{tpu_custom_call.1} parent=39 // pred_check_branch
        %1488 = sbr.rel (%p1486) target = $region44
      $region43: #{tpu_custom_call.1} parent=39 // pred_region
        %s1489 = smul.u32 16, %s21
      $region44: #{tpu_custom_call.1} parent=39 // pred_fallthru
        _
    $region40: #{tpu_custom_call.1} parent=5 // pred_fallthru
      _
    %p1490 = scmp.le.s32.totalorder 2, %s11
    // Predicated region
    $region45: #{tpu_custom_call.1} parent=5 // pred_check
      %p1491 = pneg %p1490
    $region46: #{tpu_custom_call.1} parent=5 // pred_check_branch
      %1493 = sbr.rel (%p1491) target = $region48
    $region47: #{tpu_custom_call.1} parent=5 // pred_region
      %s1494 = ssub.s32 %s11, 2
      // Predicated region
      $region49: #{tpu_custom_call.1} parent=47 // pred_check
        %p1495 = pneg %p166
      $region50: #{tpu_custom_call.1} parent=47 // pred_check_branch
        %1497 = sbr.rel (%p1495) target = $region52
      $region51: #{tpu_custom_call.1} parent=47 // pred_region
        %s1498 = smul.u32 16, %s23
        %p1499 = scmp.lt.s32.totalorder %s22, 1
        %s1500 = scalar_select %p1499, %s22, 1
        %p1501 = scmp.lt.s32.totalorder %s1498, 31
        %s1502 = scalar_select %p1501, %s1498, 31
        %s1503 = smul.addr %s1500, 32
        %s1504 = sadd.s32 %s1502, %s1503
        %s1505 = smul.addr %s1504, 8
        %s1506 = scalar_lea.vmem %s5, %s1505
      $region52: #{tpu_custom_call.1} parent=47 // pred_fallthru
        _
    $region48: #{tpu_custom_call.1} parent=5 // pred_fallthru
      _
  $region6: #{tpu_custom_call.1} parent=0 // loop_footer
    %s15 = sadd.s32 1, %s11
  $region7: #{tpu_custom_call.1} parent=0 // loop_footer_branch
    %10 = sbr.rel target = $region3
  $region8: #{tpu_custom_call.1} parent=0 // loop_exit
    _

</llo_original>
